<compile_context>
chip_gen: v5e
topology: v5e:2x2
jax: 0.10.0
libtpu: 0.0.40
codegen_flags: <defaults>
</compile_context>

<pallas_src>
import functools

import jax
import jax.numpy as jnp
import numpy as np
from jax.experimental import pallas as pl
from jax.experimental.pallas import tpu as pltpu

_LANES = 128
_INT32_MAX = np.int32(2 ** 31 - 1)


def _monotone_i32(bits):
    """Order-preserving int32 transform of float32 bit patterns (involution).

    Positive floats keep their bit pattern; negative floats get every bit but
    the sign flipped, so signed-int comparison orders the original float
    values correctly (handles tiny negative numerical distances)."""
    flip = jnp.bitwise_and(jnp.right_shift(bits, 31), jnp.int32(0x7FFFFFFF))
    return jnp.bitwise_xor(bits, flip)


def _fc_matmul(f, ct, fast_matmul):
    """Batched f @ ct with f32 accumulation on the MXU.

    fast_matmul=False: manual bf16x3 split (~f32 accuracy, 3 bf16 passes).
    fast_matmul=True: single bf16 pass (~3x faster; may flip top-k order for
    near-tied distances, so only use when index parity is not required)."""
    f_hi = f.astype(jnp.bfloat16)
    ct_hi = ct.astype(jnp.bfloat16)
    fc = jnp.einsum('pmd,pdn->pmn', f_hi, ct_hi,
                    preferred_element_type=jnp.float32)
    if fast_matmul:
        return fc
    f_lo = (f - f_hi.astype(jnp.float32)).astype(jnp.bfloat16)
    ct_lo = (ct - ct_hi.astype(jnp.float32)).astype(jnp.bfloat16)
    fc = fc + jnp.einsum('pmd,pdn->pmn', f_hi, ct_lo,
                         preferred_element_type=jnp.float32)
    fc = fc + jnp.einsum('pmd,pdn->pmn', f_lo, ct_hi,
                         preferred_element_type=jnp.float32)
    return fc


def _pedal_kernel(f_ref, ct_ref, pos_ref, loss_ref, idx_ref, *,
                  scale, k, fast_matmul):
    f = f_ref[...]              # (Pb, M, D) f32
    ct = ct_ref[...]            # (Pb, D, N) f32  (centers pre-transposed)
    pos = pos_ref[...]          # (M, 1) int32    (self-center index per patch)
    Pb, M, _ = f.shape
    N = ct.shape[2]
    neg_scale = jnp.float32(-scale)

    # dist[p,i,j] = ||f_i||^2 + ||c_j||^2 - 2 f_i . c_j   (matches addmm_)
    f2 = jnp.sum(f * f, axis=2, keepdims=True)            # (Pb, M, 1)
    c2 = jnp.sum(ct * ct, axis=1, keepdims=True)          # (Pb, 1, N) lane-aligned
    fc = _fc_matmul(f, ct, fast_matmul)                    # (Pb, M, N)
    dist = f2 + c2 - 2.0 * fc

    col_ids = jax.lax.broadcasted_iota(jnp.int32, (Pb, M, N), 2)
    excl = col_ids == pos                                  # self column mask

    # y = log sum_{j != pos_i} exp(-scale * dist[i,j]).  No max-shift on
    # purpose: mirrors torch (full underflow -> NaN -> 0 per part below).
    e_all = jnp.where(excl, 0.0, jnp.exp(neg_scale * dist))
    y = jnp.log(jnp.sum(e_all, axis=2, keepdims=True))     # (Pb, M, 1)

    # ---- top-k smallest non-self distances --------------------------------
    # Pack (distance, column) into one monotone int32 key:
    #   key = (monotone_bits(dist) with low ceil(log2 N) bits cleared) | col
    # One cross-lane min per iteration yields both the winning value and its
    # tie-broken (smallest column) index, matching torch's stable sort.  The
    # value quantisation is ~2^(log2N - 24) relative — below loss tolerance.
    npow2 = 1 << (N - 1).bit_length()
    low_mask = jnp.int32(npow2 - 1)
    hi_mask = jnp.int32(-npow2)

    mono = _monotone_i32(pltpu.bitcast(dist, jnp.int32))
    key = jnp.bitwise_or(jnp.bitwise_and(mono, hi_mask), col_ids)
    big_tile = jnp.full((Pb, M, N), _INT32_MAX, jnp.int32)            # hoisted
    lane_ids = jax.lax.broadcasted_iota(jnp.int32, (Pb, M, _LANES), 2)  # hoisted
    work0 = jnp.where(excl, big_tile, key)

    def topk_body(j, carry):
        work, x_sum, out_idx = carry
        mk = jnp.min(work, axis=2, keepdims=True)                     # (Pb, M, 1)
        mi = jnp.bitwise_and(mk, low_mask)                            # original col
        mv = pltpu.bitcast(_monotone_i32(jnp.bitwise_and(mk, hi_mask)),
                           jnp.float32)                               # ~distance
        x_sum = x_sum + jnp.exp(neg_scale * mv)
        # original column -> index into the self-excluded (filtered) view,
        # i.e. what torch's sort over dist_map[trick != position] returns.
        mi_adj = mi - (mi > pos).astype(jnp.int32)
        out_idx = jnp.where(lane_ids == j, mi_adj, out_idx)
        work = jnp.where(work == mk, big_tile, work)                  # drop winner
        return work, x_sum, out_idx

    init = (work0,
            jnp.zeros((Pb, M, 1), jnp.float32),
            jnp.zeros((Pb, M, _LANES), jnp.int32))
    _, x_sum, out_idx = jax.lax.fori_loop(0, k, topk_body, init, unroll=True)
    x = jnp.log(x_sum)                                                # (Pb, M, 1)

    # l_p = sum_i (y_i - x_i) / M ; NaN -> 0 per part (torch.where(isnan, 0))
    part_l = jnp.sum(y - x, axis=1, keepdims=True) / M                # (Pb, 1, 1)
    part_l = jnp.where(jnp.isnan(part_l), jnp.zeros_like(part_l), part_l)
    loss_ref[...] = jnp.sum(part_l, axis=0, keepdims=True)            # (1, 1, 1)

    idx_ref[...] = out_idx.astype(idx_ref.dtype)                      # lane-dense


def _tpu_vmem_capacity_bytes():
    cap = 64 * 1024 * 1024            # conservative default (v7x per-TC VMEM)
    try:
        info = pltpu.get_tpu_info()
        cap = int(getattr(info, "vmem_capacity_bytes", cap)) or cap
    except Exception:
        pass
    return cap


def _pick_parts_per_block(P, M, N, D, vmem_budget_bytes):
    """Largest divisor of P whose block fits the (layout-padded) VMEM budget,
    keeping >= 2 grid steps when P >= 2 so both v7x TensorCores get work."""
    rup = lambda x, m: -(-x // m) * m
    Mp, Np = rup(M, 8), rup(N, _LANES)
    Dl, Ds = rup(D, _LANES), rup(D, 8)
    words = (2 * Mp * Dl              # feature block, double-buffered
             + 2 * Ds * Np            # centers^T block, double-buffered
             + 2 * Mp * _LANES        # top-k index output block, double-buffered
             + 10 * Mp * Np)          # (Pb, M, N)-sized in-kernel temporaries
    cap = max(1, vmem_budget_bytes // (4 * words))
    if P >= 2:
        cap = min(cap, P // 2)        # force nb >= 2 (v7x megacore split)
    cap = max(1, min(cap, P))
    pb = 1
    for d in range(1, cap + 1):
        if P % d == 0:
            pb = d
    return pb


def pedal_topk(feature, centers, position, *, scale=10, k=10,
               parts_per_block=None, fast_matmul=False):
    """Returns (loss, top-k indices into the self-excluded center list)."""
    feature = feature.astype(jnp.float32)
    centers = centers.astype(jnp.float32)
    P, M, D = feature.shape
    N = centers.shape[1]
    assert k <= N - 1, "Pedal requires k <= N - 1 (non-self centers)"
    pos2d = position.astype(jnp.int32).reshape(M, 1)
    # wrapper-side layout plumbing: MXU wants a (K=D sublane, N lane) RHS
    centers_t = jnp.swapaxes(centers, 1, 2)                   # (P, D, N)

    vmem_cap = _tpu_vmem_capacity_bytes()
    if parts_per_block is None:
        pb = _pick_parts_per_block(P, M, N, D, int(vmem_cap * 0.65))
    else:
        pb = int(parts_per_block)
        assert P % pb == 0, "parts_per_block must divide P"
    nb = P // pb

    idx_dtype = jnp.int16 if N <= 2 ** 15 else jnp.int32

    kern = functools.partial(_pedal_kernel, scale=float(scale), k=int(k),
                             fast_matmul=bool(fast_matmul))
    loss_blocks, topk_idx = pl.pallas_call(
        kern,
        out_shape=(
            jax.ShapeDtypeStruct((nb, 1, 1), jnp.float32),
            jax.ShapeDtypeStruct((P, M, _LANES), idx_dtype),
        ),
        grid_spec=pltpu.PrefetchScalarGridSpec(
            num_scalar_prefetch=0,
            grid=(nb,),
            in_specs=[
                pl.BlockSpec((pb, M, D), lambda b: (b, 0, 0)),
                pl.BlockSpec((pb, D, N), lambda b: (b, 0, 0)),
                pl.BlockSpec((M, 1), lambda b: (0, 0)),
            ],
            out_specs=[
                pl.BlockSpec((1, 1, 1), lambda b: (b, 0, 0)),
                pl.BlockSpec((pb, M, _LANES), lambda b: (b, 0, 0)),
            ],
        ),
        compiler_params=pltpu.CompilerParams(
            dimension_semantics=("parallel",),
            vmem_limit_bytes=int(vmem_cap * 0.85)),
    )(feature, centers_t, pos2d)

    loss = jnp.sum(loss_blocks) / P
    return loss, topk_idx[:, :, :k].astype(jnp.int32)


def pedal_forward(feature, centers, position, mem_pid, *, scale=10, k=10,
                  parts_per_block=None, fast_matmul=False):
    """Matches Pedal.forward: returns (loss, all_posvid).

    all_posvid is the stacked (P, M, k) PatchMemory.pid gather at the top-k
    indices (torch returns the same values as a Python list of per-part
    tensors; slice lazily if that container is needed).  The torch module's
    `flag = pos_camid != camid` is dead code and is not reproduced."""
    loss, idx = pedal_topk(feature, centers, position, scale=scale, k=k,
                           parts_per_block=parts_per_block,
                           fast_matmul=fast_matmul)
    all_posvid = jnp.take(jnp.asarray(mem_pid), idx, axis=0)  # (P, M, k)
    return loss, all_posvid


def _pedal_ref_np(feature, centers, position, mem_pid, scale, k):
    """Pure-numpy reference mirroring the torch forward exactly."""
    P, M, D = feature.shape
    N = centers.shape[1]
    total = 0.0
    orders, filts, posvids = [], [], []
    for p in range(P):
        f, c = feature[p], centers[p]
        dist = (f ** 2).sum(1, keepdims=True) + (c ** 2).sum(1)[None, :] \
            - 2.0 * (f @ c.T)
        cols = np.broadcast_to(np.arange(N), (M, N))
        filt = dist[cols != position[:, None]].reshape(M, N - 1)
        order = np.argsort(filt, axis=1, kind="stable")
        neg = np.take_along_axis(filt, order, axis=1)
        orders.append(order)
        filts.append(filt)
        posvids.append(mem_pid[order[:, :k]])
        x = np.log(np.exp(-scale * neg[:, :k]).sum(1))
        y = np.log(np.exp(-scale * neg).sum(1))
        l = (-x + y).sum() / M
        if np.isnan(l):
            l = 0.0
        total += l
    return total / P, orders, filts, posvids


if __name__ == "__main__":
    key = jax.random.PRNGKey(0)
    P, M, N, D = 2, 16, 32, 32          # parts, patches, memory size, feat dim
    scale, k = 10, 10

    k1, k2, k3, k4 = jax.random.split(key, 4)
    # small magnitudes keep exp(-scale * dist) well away from underflow
    feature = 0.1 * jax.random.normal(k1, (P, M, D), jnp.float32)
    centers = 0.1 * jax.random.normal(k2, (P, N, D), jnp.float32)
    position = jax.random.randint(k3, (M,), 0, N, jnp.int32)   # self index / patch
    mem_pid = jax.random.randint(k4, (N,), 0, 100, jnp.int32)  # PatchMemory.pid

    f_np, c_np = np.asarray(feature), np.asarray(centers)
    pos_np, pid_np = np.asarray(position), np.asarray(mem_pid)
    ref_loss, ref_order, ref_filt, _ = _pedal_ref_np(
        f_np, c_np, pos_np, pid_np, scale, k)

    # default (auto parts-per-block -> 2 grid steps) and forced single block
    for ppb in (None, 2):
        loss, idx = pedal_topk(feature, centers, position, scale=scale, k=k,
                               parts_per_block=ppb)
        loss = float(jax.block_until_ready(loss))
        idx_np = np.asarray(jax.block_until_ready(idx))

        np.testing.assert_allclose(loss, ref_loss, rtol=1e-3, atol=1e-4)
        for p in range(P):
            for i in range(M):
                want = ref_order[p][i, :k]
                got = idx_np[p, i]
                if not np.array_equal(got, want):
                    # only benign swaps among numerically-tied distances allowed
                    np.testing.assert_allclose(ref_filt[p][i, got],
                                               ref_filt[p][i, want],
                                               rtol=0, atol=1e-5)

        loss2, posvid = pedal_forward(feature, centers, position, mem_pid,
                                      scale=scale, k=k, parts_per_block=ppb)
        posvid = np.asarray(jax.block_until_ready(posvid))
        np.testing.assert_array_equal(posvid, pid_np[idx_np])
        np.testing.assert_allclose(float(loss2), ref_loss, rtol=1e-3, atol=1e-4)

    print("KERNEL_OK")
</pallas_src>

<mosaic_0001>
module attributes {stable_mosaic.version = 11 : i64} {
  func.func @_pedal_kernel(%arg0: i32, %arg1: memref<1x16x32xf32, #tpu.memory_space<vmem>>, %arg2: memref<1x32x32xf32, #tpu.memory_space<vmem>>, %arg3: memref<16x1xi32, #tpu.memory_space<vmem>>, %arg4: memref<1x1x1xf32, #tpu.memory_space<vmem>>, %arg5: memref<1x16x128xi16, #tpu.memory_space<vmem>>) attributes {dimension_semantics = [#tpu.dimension_semantics<parallel>], iteration_bounds = array<i64: 2>, scalar_prefetch = 0 : i64, scratch_operands = 0 : i64, tpu.core_type = #tpu.core_type<tc>, window_params = [{transform_indices = @transform_0, window_bounds = array<i64: 1, 16, 32>}, {transform_indices = @transform_1, window_bounds = array<i64: 1, 32, 32>}, {pipeline_mode = #tpu.pipeline_mode<synchronous>, transform_indices = @transform_2, window_bounds = array<i64: 16, 1>}, {transform_indices = @transform_3, window_bounds = array<i64: 1, 1, 1>}, {transform_indices = @transform_4, window_bounds = array<i64: 1, 16, 128>}]} {
    %c0 = arith.constant 0 : index
    %c0_0 = arith.constant 0 : index
    %c0_1 = arith.constant 0 : index
    %0 = vector.load %arg1[%c0, %c0_0, %c0_1] : memref<1x16x32xf32, #tpu.memory_space<vmem>>, vector<1x16x32xf32>
    %c0_2 = arith.constant 0 : index
    %c0_3 = arith.constant 0 : index
    %c0_4 = arith.constant 0 : index
    %1 = vector.load %arg2[%c0_2, %c0_3, %c0_4] : memref<1x32x32xf32, #tpu.memory_space<vmem>>, vector<1x32x32xf32>
    %c0_5 = arith.constant 0 : index
    %c0_6 = arith.constant 0 : index
    %2 = vector.load %arg3[%c0_5, %c0_6] : memref<16x1xi32, #tpu.memory_space<vmem>>, vector<16x1xi32>
    %3 = arith.mulf %0, %0 : vector<1x16x32xf32>
    %cst = arith.constant dense<0.000000e+00> : vector<1x16xf32>
    %4 = vector.multi_reduction <add>, %3, %cst [2] : vector<1x16x32xf32> to vector<1x16xf32>
    %5 = vector.shape_cast %4 : vector<1x16xf32> to vector<1x16x1xf32>
    %6 = arith.mulf %1, %1 : vector<1x32x32xf32>
    %cst_7 = arith.constant dense<0.000000e+00> : vector<1x32xf32>
    %7 = vector.multi_reduction <add>, %6, %cst_7 [1] : vector<1x32x32xf32> to vector<1x32xf32>
    %8 = vector.shape_cast %7 : vector<1x32xf32> to vector<1x1x32xf32>
    %9 = arith.truncf %0 : vector<1x16x32xf32> to vector<1x16x32xbf16>
    %10 = arith.truncf %1 : vector<1x32x32xf32> to vector<1x32x32xbf16>
    "tpu.trace_start"() <{level = 10 : i32, message = "pmd,pdn->pmn"}> : () -> ()
    %cst_8 = arith.constant dense<0.000000e+00> : vector<1x16x32xf32>
    %11 = tpu.matmul %9, %10, %cst_8 {dimension_numbers = #tpu.dot_dimension_numbers<[2], [1], [1], [2], [0, 0, 0, 1, 1, 2], [0], [0]>} : vector<1x16x32xbf16>, vector<1x32x32xbf16>, vector<1x16x32xf32> -> vector<1x16x32xf32>
    "tpu.trace_stop"() : () -> ()
    %12 = arith.extf %9 : vector<1x16x32xbf16> to vector<1x16x32xf32>
    %13 = arith.subf %0, %12 : vector<1x16x32xf32>
    %14 = arith.truncf %13 : vector<1x16x32xf32> to vector<1x16x32xbf16>
    %15 = arith.extf %10 : vector<1x32x32xbf16> to vector<1x32x32xf32>
    %16 = arith.subf %1, %15 : vector<1x32x32xf32>
    %17 = arith.truncf %16 : vector<1x32x32xf32> to vector<1x32x32xbf16>
    "tpu.trace_start"() <{level = 10 : i32, message = "pmd,pdn->pmn"}> : () -> ()
    %cst_9 = arith.constant dense<0.000000e+00> : vector<1x16x32xf32>
    %18 = tpu.matmul %9, %17, %cst_9 {dimension_numbers = #tpu.dot_dimension_numbers<[2], [1], [1], [2], [0, 0, 0, 1, 1, 2], [0], [0]>} : vector<1x16x32xbf16>, vector<1x32x32xbf16>, vector<1x16x32xf32> -> vector<1x16x32xf32>
    "tpu.trace_stop"() : () -> ()
    %19 = arith.addf %11, %18 : vector<1x16x32xf32>
    "tpu.trace_start"() <{level = 10 : i32, message = "pmd,pdn->pmn"}> : () -> ()
    %cst_10 = arith.constant dense<0.000000e+00> : vector<1x16x32xf32>
    %20 = tpu.matmul %14, %10, %cst_10 {dimension_numbers = #tpu.dot_dimension_numbers<[2], [1], [1], [2], [0, 0, 0, 1, 1, 2], [0], [0]>} : vector<1x16x32xbf16>, vector<1x32x32xbf16>, vector<1x16x32xf32> -> vector<1x16x32xf32>
    "tpu.trace_stop"() : () -> ()
    %21 = arith.addf %19, %20 : vector<1x16x32xf32>
    %22 = vector.broadcast %5 : vector<1x16x1xf32> to vector<1x16x32xf32>
    %23 = vector.broadcast %8 : vector<1x1x32xf32> to vector<1x16x32xf32>
    %24 = arith.addf %22, %23 : vector<1x16x32xf32>
    %cst_11 = arith.constant 2.000000e+00 : f32
    %25 = vector.broadcast %cst_11 : f32 to vector<1x16x32xf32>
    %26 = arith.mulf %25, %21 : vector<1x16x32xf32>
    %27 = arith.subf %24, %26 : vector<1x16x32xf32>
    %28 = tpu.iota {dimensions = array<i32: 2>} : vector<1x16x32xi32>
    %29 = vector.shape_cast %2 : vector<16x1xi32> to vector<1x16x1xi32>
    %30 = vector.broadcast %29 : vector<1x16x1xi32> to vector<1x16x32xi32>
    %31 = arith.cmpi eq, %28, %30 : vector<1x16x32xi32>
    %cst_12 = arith.constant -1.000000e+01 : f32
    %32 = vector.broadcast %cst_12 : f32 to vector<1x16x32xf32>
    %33 = arith.mulf %32, %27 : vector<1x16x32xf32>
    %34 = math.exp %33 : vector<1x16x32xf32>
    %cst_13 = arith.constant 0.000000e+00 : f32
    %35 = vector.broadcast %cst_13 : f32 to vector<1x16x32xf32>
    %36 = arith.select %31, %35, %34 : vector<1x16x32xi1>, vector<1x16x32xf32>
    %cst_14 = arith.constant dense<0.000000e+00> : vector<1x16xf32>
    %37 = vector.multi_reduction <add>, %36, %cst_14 [2] : vector<1x16x32xf32> to vector<1x16xf32>
    %38 = vector.shape_cast %37 : vector<1x16xf32> to vector<1x16x1xf32>
    %39 = math.log %38 : vector<1x16x1xf32>
    %40 = tpu.bitcast %27 : vector<1x16x32xf32> -> vector<1x16x32xi32>
    %c31_i32 = arith.constant 31 : i32
    %41 = vector.broadcast %c31_i32 : i32 to vector<1x16x32xi32>
    %42 = arith.shrsi %40, %41 : vector<1x16x32xi32>
    %c2147483647_i32 = arith.constant 2147483647 : i32
    %43 = vector.broadcast %c2147483647_i32 : i32 to vector<1x16x32xi32>
    %44 = arith.andi %42, %43 : vector<1x16x32xi32>
    %45 = arith.xori %40, %44 : vector<1x16x32xi32>
    %c-32_i32 = arith.constant -32 : i32
    %46 = vector.broadcast %c-32_i32 : i32 to vector<1x16x32xi32>
    %47 = arith.andi %45, %46 : vector<1x16x32xi32>
    %48 = arith.ori %47, %28 : vector<1x16x32xi32>
    %c2147483647_i32_15 = arith.constant 2147483647 : i32
    %49 = vector.broadcast %c2147483647_i32_15 : i32 to vector<1x16x32xi32>
    %50 = tpu.iota {dimensions = array<i32: 2>} : vector<1x16x128xi32>
    %51 = arith.select %31, %49, %48 : vector<1x16x32xi1>, vector<1x16x32xi32>
    %cst_16 = arith.constant 0.000000e+00 : f32
    %52 = vector.broadcast %cst_16 : f32 to vector<1x16x1xf32>
    %c0_i32 = arith.constant 0 : i32
    %53 = vector.broadcast %c0_i32 : i32 to vector<1x16x128xi32>
    %c31_i32_17 = arith.constant 31 : i32
    %c-32_i32_18 = arith.constant -32 : i32
    %cst_19 = arith.constant -1.000000e+01 : f32
    %c0_i32_20 = arith.constant 0 : i32
    %cst_21 = arith.constant dense<2147483647> : vector<1x16xi32>
    %54 = vector.multi_reduction <minsi>, %51, %cst_21 [2] : vector<1x16x32xi32> to vector<1x16xi32>
    %55 = vector.shape_cast %54 : vector<1x16xi32> to vector<1x16x1xi32>
    %56 = vector.broadcast %c31_i32_17 : i32 to vector<1x16x1xi32>
    %57 = arith.andi %55, %56 : vector<1x16x1xi32>
    %58 = vector.broadcast %c-32_i32_18 : i32 to vector<1x16x1xi32>
    %59 = arith.andi %55, %58 : vector<1x16x1xi32>
    %c31_i32_22 = arith.constant 31 : i32
    %60 = vector.broadcast %c31_i32_22 : i32 to vector<1x16x1xi32>
    %61 = arith.shrsi %59, %60 : vector<1x16x1xi32>
    %c2147483647_i32_23 = arith.constant 2147483647 : i32
    %62 = vector.broadcast %c2147483647_i32_23 : i32 to vector<1x16x1xi32>
    %63 = arith.andi %61, %62 : vector<1x16x1xi32>
    %64 = arith.xori %59, %63 : vector<1x16x1xi32>
    %65 = tpu.bitcast %64 : vector<1x16x1xi32> -> vector<1x16x1xf32>
    %66 = vector.broadcast %cst_19 : f32 to vector<1x16x1xf32>
    %67 = arith.mulf %66, %65 : vector<1x16x1xf32>
    %68 = math.exp %67 : vector<1x16x1xf32>
    %69 = arith.addf %52, %68 : vector<1x16x1xf32>
    %70 = vector.shape_cast %2 : vector<16x1xi32> to vector<1x16x1xi32>
    %71 = arith.cmpi sgt, %57, %70 : vector<1x16x1xi32>
    %72 = arith.extui %71 : vector<1x16x1xi1> to vector<1x16x1xi32>
    %73 = arith.subi %57, %72 : vector<1x16x1xi32>
    %74 = vector.broadcast %c0_i32_20 : i32 to vector<1x16x128xi32>
    %75 = arith.cmpi eq, %50, %74 : vector<1x16x128xi32>
    %76 = vector.shape_cast %73 : vector<1x16x1xi32> to vector<1x16x1xi32>
    %77 = vector.broadcast %76 : vector<1x16x1xi32> to vector<1x16x128xi32>
    %78 = arith.select %75, %77, %53 : vector<1x16x128xi1>, vector<1x16x128xi32>
    %79 = vector.broadcast %55 : vector<1x16x1xi32> to vector<1x16x32xi32>
    %80 = arith.cmpi eq, %51, %79 : vector<1x16x32xi32>
    %81 = arith.select %80, %49, %51 : vector<1x16x32xi1>, vector<1x16x32xi32>
    %c1_i32 = arith.constant 1 : i32
    %cst_24 = arith.constant dense<2147483647> : vector<1x16xi32>
    %82 = vector.multi_reduction <minsi>, %81, %cst_24 [2] : vector<1x16x32xi32> to vector<1x16xi32>
    %83 = vector.shape_cast %82 : vector<1x16xi32> to vector<1x16x1xi32>
    %84 = vector.broadcast %c31_i32_17 : i32 to vector<1x16x1xi32>
    %85 = arith.andi %83, %84 : vector<1x16x1xi32>
    %86 = vector.broadcast %c-32_i32_18 : i32 to vector<1x16x1xi32>
    %87 = arith.andi %83, %86 : vector<1x16x1xi32>
    %c31_i32_25 = arith.constant 31 : i32
    %88 = vector.broadcast %c31_i32_25 : i32 to vector<1x16x1xi32>
    %89 = arith.shrsi %87, %88 : vector<1x16x1xi32>
    %c2147483647_i32_26 = arith.constant 2147483647 : i32
    %90 = vector.broadcast %c2147483647_i32_26 : i32 to vector<1x16x1xi32>
    %91 = arith.andi %89, %90 : vector<1x16x1xi32>
    %92 = arith.xori %87, %91 : vector<1x16x1xi32>
    %93 = tpu.bitcast %92 : vector<1x16x1xi32> -> vector<1x16x1xf32>
    %94 = vector.broadcast %cst_19 : f32 to vector<1x16x1xf32>
    %95 = arith.mulf %94, %93 : vector<1x16x1xf32>
    %96 = math.exp %95 : vector<1x16x1xf32>
    %97 = arith.addf %69, %96 : vector<1x16x1xf32>
    %98 = vector.shape_cast %2 : vector<16x1xi32> to vector<1x16x1xi32>
    %99 = arith.cmpi sgt, %85, %98 : vector<1x16x1xi32>
    %100 = arith.extui %99 : vector<1x16x1xi1> to vector<1x16x1xi32>
    %101 = arith.subi %85, %100 : vector<1x16x1xi32>
    %102 = vector.broadcast %c1_i32 : i32 to vector<1x16x128xi32>
    %103 = arith.cmpi eq, %50, %102 : vector<1x16x128xi32>
    %104 = vector.shape_cast %101 : vector<1x16x1xi32> to vector<1x16x1xi32>
    %105 = vector.broadcast %104 : vector<1x16x1xi32> to vector<1x16x128xi32>
    %106 = arith.select %103, %105, %78 : vector<1x16x128xi1>, vector<1x16x128xi32>
    %107 = vector.broadcast %83 : vector<1x16x1xi32> to vector<1x16x32xi32>
    %108 = arith.cmpi eq, %81, %107 : vector<1x16x32xi32>
    %109 = arith.select %108, %49, %81 : vector<1x16x32xi1>, vector<1x16x32xi32>
    %c2_i32 = arith.constant 2 : i32
    %cst_27 = arith.constant dense<2147483647> : vector<1x16xi32>
    %110 = vector.multi_reduction <minsi>, %109, %cst_27 [2] : vector<1x16x32xi32> to vector<1x16xi32>
    %111 = vector.shape_cast %110 : vector<1x16xi32> to vector<1x16x1xi32>
    %112 = vector.broadcast %c31_i32_17 : i32 to vector<1x16x1xi32>
    %113 = arith.andi %111, %112 : vector<1x16x1xi32>
    %114 = vector.broadcast %c-32_i32_18 : i32 to vector<1x16x1xi32>
    %115 = arith.andi %111, %114 : vector<1x16x1xi32>
    %c31_i32_28 = arith.constant 31 : i32
    %116 = vector.broadcast %c31_i32_28 : i32 to vector<1x16x1xi32>
    %117 = arith.shrsi %115, %116 : vector<1x16x1xi32>
    %c2147483647_i32_29 = arith.constant 2147483647 : i32
    %118 = vector.broadcast %c2147483647_i32_29 : i32 to vector<1x16x1xi32>
    %119 = arith.andi %117, %118 : vector<1x16x1xi32>
    %120 = arith.xori %115, %119 : vector<1x16x1xi32>
    %121 = tpu.bitcast %120 : vector<1x16x1xi32> -> vector<1x16x1xf32>
    %122 = vector.broadcast %cst_19 : f32 to vector<1x16x1xf32>
    %123 = arith.mulf %122, %121 : vector<1x16x1xf32>
    %124 = math.exp %123 : vector<1x16x1xf32>
    %125 = arith.addf %97, %124 : vector<1x16x1xf32>
    %126 = vector.shape_cast %2 : vector<16x1xi32> to vector<1x16x1xi32>
    %127 = arith.cmpi sgt, %113, %126 : vector<1x16x1xi32>
    %128 = arith.extui %127 : vector<1x16x1xi1> to vector<1x16x1xi32>
    %129 = arith.subi %113, %128 : vector<1x16x1xi32>
    %130 = vector.broadcast %c2_i32 : i32 to vector<1x16x128xi32>
    %131 = arith.cmpi eq, %50, %130 : vector<1x16x128xi32>
    %132 = vector.shape_cast %129 : vector<1x16x1xi32> to vector<1x16x1xi32>
    %133 = vector.broadcast %132 : vector<1x16x1xi32> to vector<1x16x128xi32>
    %134 = arith.select %131, %133, %106 : vector<1x16x128xi1>, vector<1x16x128xi32>
    %135 = vector.broadcast %111 : vector<1x16x1xi32> to vector<1x16x32xi32>
    %136 = arith.cmpi eq, %109, %135 : vector<1x16x32xi32>
    %137 = arith.select %136, %49, %109 : vector<1x16x32xi1>, vector<1x16x32xi32>
    %c3_i32 = arith.constant 3 : i32
    %cst_30 = arith.constant dense<2147483647> : vector<1x16xi32>
    %138 = vector.multi_reduction <minsi>, %137, %cst_30 [2] : vector<1x16x32xi32> to vector<1x16xi32>
    %139 = vector.shape_cast %138 : vector<1x16xi32> to vector<1x16x1xi32>
    %140 = vector.broadcast %c31_i32_17 : i32 to vector<1x16x1xi32>
    %141 = arith.andi %139, %140 : vector<1x16x1xi32>
    %142 = vector.broadcast %c-32_i32_18 : i32 to vector<1x16x1xi32>
    %143 = arith.andi %139, %142 : vector<1x16x1xi32>
    %c31_i32_31 = arith.constant 31 : i32
    %144 = vector.broadcast %c31_i32_31 : i32 to vector<1x16x1xi32>
    %145 = arith.shrsi %143, %144 : vector<1x16x1xi32>
    %c2147483647_i32_32 = arith.constant 2147483647 : i32
    %146 = vector.broadcast %c2147483647_i32_32 : i32 to vector<1x16x1xi32>
    %147 = arith.andi %145, %146 : vector<1x16x1xi32>
    %148 = arith.xori %143, %147 : vector<1x16x1xi32>
    %149 = tpu.bitcast %148 : vector<1x16x1xi32> -> vector<1x16x1xf32>
    %150 = vector.broadcast %cst_19 : f32 to vector<1x16x1xf32>
    %151 = arith.mulf %150, %149 : vector<1x16x1xf32>
    %152 = math.exp %151 : vector<1x16x1xf32>
    %153 = arith.addf %125, %152 : vector<1x16x1xf32>
    %154 = vector.shape_cast %2 : vector<16x1xi32> to vector<1x16x1xi32>
    %155 = arith.cmpi sgt, %141, %154 : vector<1x16x1xi32>
    %156 = arith.extui %155 : vector<1x16x1xi1> to vector<1x16x1xi32>
    %157 = arith.subi %141, %156 : vector<1x16x1xi32>
    %158 = vector.broadcast %c3_i32 : i32 to vector<1x16x128xi32>
    %159 = arith.cmpi eq, %50, %158 : vector<1x16x128xi32>
    %160 = vector.shape_cast %157 : vector<1x16x1xi32> to vector<1x16x1xi32>
    %161 = vector.broadcast %160 : vector<1x16x1xi32> to vector<1x16x128xi32>
    %162 = arith.select %159, %161, %134 : vector<1x16x128xi1>, vector<1x16x128xi32>
    %163 = vector.broadcast %139 : vector<1x16x1xi32> to vector<1x16x32xi32>
    %164 = arith.cmpi eq, %137, %163 : vector<1x16x32xi32>
    %165 = arith.select %164, %49, %137 : vector<1x16x32xi1>, vector<1x16x32xi32>
    %c4_i32 = arith.constant 4 : i32
    %cst_33 = arith.constant dense<2147483647> : vector<1x16xi32>
    %166 = vector.multi_reduction <minsi>, %165, %cst_33 [2] : vector<1x16x32xi32> to vector<1x16xi32>
    %167 = vector.shape_cast %166 : vector<1x16xi32> to vector<1x16x1xi32>
    %168 = vector.broadcast %c31_i32_17 : i32 to vector<1x16x1xi32>
    %169 = arith.andi %167, %168 : vector<1x16x1xi32>
    %170 = vector.broadcast %c-32_i32_18 : i32 to vector<1x16x1xi32>
    %171 = arith.andi %167, %170 : vector<1x16x1xi32>
    %c31_i32_34 = arith.constant 31 : i32
    %172 = vector.broadcast %c31_i32_34 : i32 to vector<1x16x1xi32>
    %173 = arith.shrsi %171, %172 : vector<1x16x1xi32>
    %c2147483647_i32_35 = arith.constant 2147483647 : i32
    %174 = vector.broadcast %c2147483647_i32_35 : i32 to vector<1x16x1xi32>
    %175 = arith.andi %173, %174 : vector<1x16x1xi32>
    %176 = arith.xori %171, %175 : vector<1x16x1xi32>
    %177 = tpu.bitcast %176 : vector<1x16x1xi32> -> vector<1x16x1xf32>
    %178 = vector.broadcast %cst_19 : f32 to vector<1x16x1xf32>
    %179 = arith.mulf %178, %177 : vector<1x16x1xf32>
    %180 = math.exp %179 : vector<1x16x1xf32>
    %181 = arith.addf %153, %180 : vector<1x16x1xf32>
    %182 = vector.shape_cast %2 : vector<16x1xi32> to vector<1x16x1xi32>
    %183 = arith.cmpi sgt, %169, %182 : vector<1x16x1xi32>
    %184 = arith.extui %183 : vector<1x16x1xi1> to vector<1x16x1xi32>
    %185 = arith.subi %169, %184 : vector<1x16x1xi32>
    %186 = vector.broadcast %c4_i32 : i32 to vector<1x16x128xi32>
    %187 = arith.cmpi eq, %50, %186 : vector<1x16x128xi32>
    %188 = vector.shape_cast %185 : vector<1x16x1xi32> to vector<1x16x1xi32>
    %189 = vector.broadcast %188 : vector<1x16x1xi32> to vector<1x16x128xi32>
    %190 = arith.select %187, %189, %162 : vector<1x16x128xi1>, vector<1x16x128xi32>
    %191 = vector.broadcast %167 : vector<1x16x1xi32> to vector<1x16x32xi32>
    %192 = arith.cmpi eq, %165, %191 : vector<1x16x32xi32>
    %193 = arith.select %192, %49, %165 : vector<1x16x32xi1>, vector<1x16x32xi32>
    %c5_i32 = arith.constant 5 : i32
    %cst_36 = arith.constant dense<2147483647> : vector<1x16xi32>
    %194 = vector.multi_reduction <minsi>, %193, %cst_36 [2] : vector<1x16x32xi32> to vector<1x16xi32>
    %195 = vector.shape_cast %194 : vector<1x16xi32> to vector<1x16x1xi32>
    %196 = vector.broadcast %c31_i32_17 : i32 to vector<1x16x1xi32>
    %197 = arith.andi %195, %196 : vector<1x16x1xi32>
    %198 = vector.broadcast %c-32_i32_18 : i32 to vector<1x16x1xi32>
    %199 = arith.andi %195, %198 : vector<1x16x1xi32>
    %c31_i32_37 = arith.constant 31 : i32
    %200 = vector.broadcast %c31_i32_37 : i32 to vector<1x16x1xi32>
    %201 = arith.shrsi %199, %200 : vector<1x16x1xi32>
    %c2147483647_i32_38 = arith.constant 2147483647 : i32
    %202 = vector.broadcast %c2147483647_i32_38 : i32 to vector<1x16x1xi32>
    %203 = arith.andi %201, %202 : vector<1x16x1xi32>
    %204 = arith.xori %199, %203 : vector<1x16x1xi32>
    %205 = tpu.bitcast %204 : vector<1x16x1xi32> -> vector<1x16x1xf32>
    %206 = vector.broadcast %cst_19 : f32 to vector<1x16x1xf32>
    %207 = arith.mulf %206, %205 : vector<1x16x1xf32>
    %208 = math.exp %207 : vector<1x16x1xf32>
    %209 = arith.addf %181, %208 : vector<1x16x1xf32>
    %210 = vector.shape_cast %2 : vector<16x1xi32> to vector<1x16x1xi32>
    %211 = arith.cmpi sgt, %197, %210 : vector<1x16x1xi32>
    %212 = arith.extui %211 : vector<1x16x1xi1> to vector<1x16x1xi32>
    %213 = arith.subi %197, %212 : vector<1x16x1xi32>
    %214 = vector.broadcast %c5_i32 : i32 to vector<1x16x128xi32>
    %215 = arith.cmpi eq, %50, %214 : vector<1x16x128xi32>
    %216 = vector.shape_cast %213 : vector<1x16x1xi32> to vector<1x16x1xi32>
    %217 = vector.broadcast %216 : vector<1x16x1xi32> to vector<1x16x128xi32>
    %218 = arith.select %215, %217, %190 : vector<1x16x128xi1>, vector<1x16x128xi32>
    %219 = vector.broadcast %195 : vector<1x16x1xi32> to vector<1x16x32xi32>
    %220 = arith.cmpi eq, %193, %219 : vector<1x16x32xi32>
    %221 = arith.select %220, %49, %193 : vector<1x16x32xi1>, vector<1x16x32xi32>
    %c6_i32 = arith.constant 6 : i32
    %cst_39 = arith.constant dense<2147483647> : vector<1x16xi32>
    %222 = vector.multi_reduction <minsi>, %221, %cst_39 [2] : vector<1x16x32xi32> to vector<1x16xi32>
    %223 = vector.shape_cast %222 : vector<1x16xi32> to vector<1x16x1xi32>
    %224 = vector.broadcast %c31_i32_17 : i32 to vector<1x16x1xi32>
    %225 = arith.andi %223, %224 : vector<1x16x1xi32>
    %226 = vector.broadcast %c-32_i32_18 : i32 to vector<1x16x1xi32>
    %227 = arith.andi %223, %226 : vector<1x16x1xi32>
    %c31_i32_40 = arith.constant 31 : i32
    %228 = vector.broadcast %c31_i32_40 : i32 to vector<1x16x1xi32>
    %229 = arith.shrsi %227, %228 : vector<1x16x1xi32>
    %c2147483647_i32_41 = arith.constant 2147483647 : i32
    %230 = vector.broadcast %c2147483647_i32_41 : i32 to vector<1x16x1xi32>
    %231 = arith.andi %229, %230 : vector<1x16x1xi32>
    %232 = arith.xori %227, %231 : vector<1x16x1xi32>
    %233 = tpu.bitcast %232 : vector<1x16x1xi32> -> vector<1x16x1xf32>
    %234 = vector.broadcast %cst_19 : f32 to vector<1x16x1xf32>
    %235 = arith.mulf %234, %233 : vector<1x16x1xf32>
    %236 = math.exp %235 : vector<1x16x1xf32>
    %237 = arith.addf %209, %236 : vector<1x16x1xf32>
    %238 = vector.shape_cast %2 : vector<16x1xi32> to vector<1x16x1xi32>
    %239 = arith.cmpi sgt, %225, %238 : vector<1x16x1xi32>
    %240 = arith.extui %239 : vector<1x16x1xi1> to vector<1x16x1xi32>
    %241 = arith.subi %225, %240 : vector<1x16x1xi32>
    %242 = vector.broadcast %c6_i32 : i32 to vector<1x16x128xi32>
    %243 = arith.cmpi eq, %50, %242 : vector<1x16x128xi32>
    %244 = vector.shape_cast %241 : vector<1x16x1xi32> to vector<1x16x1xi32>
    %245 = vector.broadcast %244 : vector<1x16x1xi32> to vector<1x16x128xi32>
    %246 = arith.select %243, %245, %218 : vector<1x16x128xi1>, vector<1x16x128xi32>
    %247 = vector.broadcast %223 : vector<1x16x1xi32> to vector<1x16x32xi32>
    %248 = arith.cmpi eq, %221, %247 : vector<1x16x32xi32>
    %249 = arith.select %248, %49, %221 : vector<1x16x32xi1>, vector<1x16x32xi32>
    %c7_i32 = arith.constant 7 : i32
    %cst_42 = arith.constant dense<2147483647> : vector<1x16xi32>
    %250 = vector.multi_reduction <minsi>, %249, %cst_42 [2] : vector<1x16x32xi32> to vector<1x16xi32>
    %251 = vector.shape_cast %250 : vector<1x16xi32> to vector<1x16x1xi32>
    %252 = vector.broadcast %c31_i32_17 : i32 to vector<1x16x1xi32>
    %253 = arith.andi %251, %252 : vector<1x16x1xi32>
    %254 = vector.broadcast %c-32_i32_18 : i32 to vector<1x16x1xi32>
    %255 = arith.andi %251, %254 : vector<1x16x1xi32>
    %c31_i32_43 = arith.constant 31 : i32
    %256 = vector.broadcast %c31_i32_43 : i32 to vector<1x16x1xi32>
    %257 = arith.shrsi %255, %256 : vector<1x16x1xi32>
    %c2147483647_i32_44 = arith.constant 2147483647 : i32
    %258 = vector.broadcast %c2147483647_i32_44 : i32 to vector<1x16x1xi32>
    %259 = arith.andi %257, %258 : vector<1x16x1xi32>
    %260 = arith.xori %255, %259 : vector<1x16x1xi32>
    %261 = tpu.bitcast %260 : vector<1x16x1xi32> -> vector<1x16x1xf32>
    %262 = vector.broadcast %cst_19 : f32 to vector<1x16x1xf32>
    %263 = arith.mulf %262, %261 : vector<1x16x1xf32>
    %264 = math.exp %263 : vector<1x16x1xf32>
    %265 = arith.addf %237, %264 : vector<1x16x1xf32>
    %266 = vector.shape_cast %2 : vector<16x1xi32> to vector<1x16x1xi32>
    %267 = arith.cmpi sgt, %253, %266 : vector<1x16x1xi32>
    %268 = arith.extui %267 : vector<1x16x1xi1> to vector<1x16x1xi32>
    %269 = arith.subi %253, %268 : vector<1x16x1xi32>
    %270 = vector.broadcast %c7_i32 : i32 to vector<1x16x128xi32>
    %271 = arith.cmpi eq, %50, %270 : vector<1x16x128xi32>
    %272 = vector.shape_cast %269 : vector<1x16x1xi32> to vector<1x16x1xi32>
    %273 = vector.broadcast %272 : vector<1x16x1xi32> to vector<1x16x128xi32>
    %274 = arith.select %271, %273, %246 : vector<1x16x128xi1>, vector<1x16x128xi32>
    %275 = vector.broadcast %251 : vector<1x16x1xi32> to vector<1x16x32xi32>
    %276 = arith.cmpi eq, %249, %275 : vector<1x16x32xi32>
    %277 = arith.select %276, %49, %249 : vector<1x16x32xi1>, vector<1x16x32xi32>
    %c8_i32 = arith.constant 8 : i32
    %cst_45 = arith.constant dense<2147483647> : vector<1x16xi32>
    %278 = vector.multi_reduction <minsi>, %277, %cst_45 [2] : vector<1x16x32xi32> to vector<1x16xi32>
    %279 = vector.shape_cast %278 : vector<1x16xi32> to vector<1x16x1xi32>
    %280 = vector.broadcast %c31_i32_17 : i32 to vector<1x16x1xi32>
    %281 = arith.andi %279, %280 : vector<1x16x1xi32>
    %282 = vector.broadcast %c-32_i32_18 : i32 to vector<1x16x1xi32>
    %283 = arith.andi %279, %282 : vector<1x16x1xi32>
    %c31_i32_46 = arith.constant 31 : i32
    %284 = vector.broadcast %c31_i32_46 : i32 to vector<1x16x1xi32>
    %285 = arith.shrsi %283, %284 : vector<1x16x1xi32>
    %c2147483647_i32_47 = arith.constant 2147483647 : i32
    %286 = vector.broadcast %c2147483647_i32_47 : i32 to vector<1x16x1xi32>
    %287 = arith.andi %285, %286 : vector<1x16x1xi32>
    %288 = arith.xori %283, %287 : vector<1x16x1xi32>
    %289 = tpu.bitcast %288 : vector<1x16x1xi32> -> vector<1x16x1xf32>
    %290 = vector.broadcast %cst_19 : f32 to vector<1x16x1xf32>
    %291 = arith.mulf %290, %289 : vector<1x16x1xf32>
    %292 = math.exp %291 : vector<1x16x1xf32>
    %293 = arith.addf %265, %292 : vector<1x16x1xf32>
    %294 = vector.shape_cast %2 : vector<16x1xi32> to vector<1x16x1xi32>
    %295 = arith.cmpi sgt, %281, %294 : vector<1x16x1xi32>
    %296 = arith.extui %295 : vector<1x16x1xi1> to vector<1x16x1xi32>
    %297 = arith.subi %281, %296 : vector<1x16x1xi32>
    %298 = vector.broadcast %c8_i32 : i32 to vector<1x16x128xi32>
    %299 = arith.cmpi eq, %50, %298 : vector<1x16x128xi32>
    %300 = vector.shape_cast %297 : vector<1x16x1xi32> to vector<1x16x1xi32>
    %301 = vector.broadcast %300 : vector<1x16x1xi32> to vector<1x16x128xi32>
    %302 = arith.select %299, %301, %274 : vector<1x16x128xi1>, vector<1x16x128xi32>
    %303 = vector.broadcast %279 : vector<1x16x1xi32> to vector<1x16x32xi32>
    %304 = arith.cmpi eq, %277, %303 : vector<1x16x32xi32>
    %305 = arith.select %304, %49, %277 : vector<1x16x32xi1>, vector<1x16x32xi32>
    %c9_i32 = arith.constant 9 : i32
    %cst_48 = arith.constant dense<2147483647> : vector<1x16xi32>
    %306 = vector.multi_reduction <minsi>, %305, %cst_48 [2] : vector<1x16x32xi32> to vector<1x16xi32>
    %307 = vector.shape_cast %306 : vector<1x16xi32> to vector<1x16x1xi32>
    %308 = vector.broadcast %c31_i32_17 : i32 to vector<1x16x1xi32>
    %309 = arith.andi %307, %308 : vector<1x16x1xi32>
    %310 = vector.broadcast %c-32_i32_18 : i32 to vector<1x16x1xi32>
    %311 = arith.andi %307, %310 : vector<1x16x1xi32>
    %c31_i32_49 = arith.constant 31 : i32
    %312 = vector.broadcast %c31_i32_49 : i32 to vector<1x16x1xi32>
    %313 = arith.shrsi %311, %312 : vector<1x16x1xi32>
    %c2147483647_i32_50 = arith.constant 2147483647 : i32
    %314 = vector.broadcast %c2147483647_i32_50 : i32 to vector<1x16x1xi32>
    %315 = arith.andi %313, %314 : vector<1x16x1xi32>
    %316 = arith.xori %311, %315 : vector<1x16x1xi32>
    %317 = tpu.bitcast %316 : vector<1x16x1xi32> -> vector<1x16x1xf32>
    %318 = vector.broadcast %cst_19 : f32 to vector<1x16x1xf32>
    %319 = arith.mulf %318, %317 : vector<1x16x1xf32>
    %320 = math.exp %319 : vector<1x16x1xf32>
    %321 = arith.addf %293, %320 : vector<1x16x1xf32>
    %322 = vector.shape_cast %2 : vector<16x1xi32> to vector<1x16x1xi32>
    %323 = arith.cmpi sgt, %309, %322 : vector<1x16x1xi32>
    %324 = arith.extui %323 : vector<1x16x1xi1> to vector<1x16x1xi32>
    %325 = arith.subi %309, %324 : vector<1x16x1xi32>
    %326 = vector.broadcast %c9_i32 : i32 to vector<1x16x128xi32>
    %327 = arith.cmpi eq, %50, %326 : vector<1x16x128xi32>
    %328 = vector.shape_cast %325 : vector<1x16x1xi32> to vector<1x16x1xi32>
    %329 = vector.broadcast %328 : vector<1x16x1xi32> to vector<1x16x128xi32>
    %330 = arith.select %327, %329, %302 : vector<1x16x128xi1>, vector<1x16x128xi32>
    %331 = vector.broadcast %307 : vector<1x16x1xi32> to vector<1x16x32xi32>
    %332 = arith.cmpi eq, %305, %331 : vector<1x16x32xi32>
    %333 = arith.select %332, %49, %305 : vector<1x16x32xi1>, vector<1x16x32xi32>
    %c10_i32 = arith.constant 10 : i32
    %334 = math.log %321 : vector<1x16x1xf32>
    %335 = arith.subf %39, %334 : vector<1x16x1xf32>
    %cst_51 = arith.constant dense<0.000000e+00> : vector<1x1xf32>
    %336 = vector.multi_reduction <add>, %335, %cst_51 [1] : vector<1x16x1xf32> to vector<1x1xf32>
    %337 = vector.shape_cast %336 : vector<1x1xf32> to vector<1x1x1xf32>
    %cst_52 = arith.constant 1.600000e+01 : f32
    %338 = vector.broadcast %cst_52 : f32 to vector<1x1x1xf32>
    %339 = arith.divf %337, %338 : vector<1x1x1xf32>
    %340 = arith.cmpf one, %339, %339 : vector<1x1x1xf32>
    %cst_53 = arith.constant 0.000000e+00 : f32
    %341 = vector.broadcast %cst_53 : f32 to vector<1x1x1xf32>
    %342 = arith.select %340, %341, %339 : vector<1x1x1xi1>, vector<1x1x1xf32>
    %cst_54 = arith.constant dense<0.000000e+00> : vector<1x1xf32>
    %343 = vector.multi_reduction <add>, %342, %cst_54 [0] : vector<1x1x1xf32> to vector<1x1xf32>
    %344 = vector.shape_cast %343 : vector<1x1xf32> to vector<1x1x1xf32>
    %c0_55 = arith.constant 0 : index
    %c0_56 = arith.constant 0 : index
    %c0_57 = arith.constant 0 : index
    %345 = vector.load %arg4[%c0_55, %c0_56, %c0_57] : memref<1x1x1xf32, #tpu.memory_space<vmem>>, vector<1x1x1xf32>
    tpu.vector_store %arg4[%c0_55, %c0_56, %c0_57], %344 {strides = array<i32>} : memref<1x1x1xf32, #tpu.memory_space<vmem>>, vector<1x1x1xf32>,
    %346 = arith.trunci %330 : vector<1x16x128xi32> to vector<1x16x128xi16>
    %c0_58 = arith.constant 0 : index
    %c0_59 = arith.constant 0 : index
    %c0_60 = arith.constant 0 : index
    %347 = vector.load %arg5[%c0_58, %c0_59, %c0_60] : memref<1x16x128xi16, #tpu.memory_space<vmem>>, vector<1x16x128xi16>
    tpu.vector_store %arg5[%c0_58, %c0_59, %c0_60], %346 {strides = array<i32>} : memref<1x16x128xi16, #tpu.memory_space<vmem>>, vector<1x16x128xi16>,
    return
  }
  func.func @transform_0(%arg0: i32) -> (i32, i32, i32) {
    %c0_i32 = arith.constant 0 : i32
    %c0_i32_0 = arith.constant 0 : i32
    %c0_i32_1 = arith.constant 0 : i32
    return %arg0, %c0_i32, %c0_i32_0 : i32, i32, i32
  }
  func.func @transform_1(%arg0: i32) -> (i32, i32, i32) {
    %c0_i32 = arith.constant 0 : i32
    %c0_i32_0 = arith.constant 0 : i32
    %c0_i32_1 = arith.constant 0 : i32
    return %arg0, %c0_i32, %c0_i32_0 : i32, i32, i32
  }
  func.func @transform_2(%arg0: i32) -> (i32, i32) {
    %c0_i32 = arith.constant 0 : i32
    %c0_i32_0 = arith.constant 0 : i32
    %c0_i32_1 = arith.constant 0 : i32
    return %c0_i32, %c0_i32_0 : i32, i32
  }
  func.func @transform_3(%arg0: i32) -> (i32, i32, i32) {
    %c0_i32 = arith.constant 0 : i32
    %c0_i32_0 = arith.constant 0 : i32
    %c0_i32_1 = arith.constant 0 : i32
    return %arg0, %c0_i32, %c0_i32_0 : i32, i32, i32
  }
  func.func @transform_4(%arg0: i32) -> (i32, i32, i32) {
    %c0_i32 = arith.constant 0 : i32
    %c0_i32_0 = arith.constant 0 : i32
    %c0_i32_1 = arith.constant 0 : i32
    return %arg0, %c0_i32, %c0_i32_0 : i32, i32, i32
  }
}

</mosaic_0001>

<llo_original>
// kernel: tpu_custom_call.1
$region0: #{tpu_custom_call.1}
  #allocation0 [shape = 'u32[]', space=smem, size = 0x4, offset = 0x4, fixed_abs, tag = 'smem constant byte address 0x4 - core index']
  #allocation1 [shape = 'u32[72,128]{1,0:T(1,128)}', space=vmem, size = 0x9000, scoped, tag = 'internal scratch']
  %s0 = inlined_call_operand.hbm [shape: f32[2,16,32], index: 0, kind: input, shape index: {}]
  %s1 = inlined_call_operand.hbm [shape: f32[2,32,32], index: 1, kind: input, shape index: {}]
  %s2 = inlined_call_operand.vmem [shape: s32[16,1], index: 2, kind: input, shape index: {}]
  %s3 = inlined_call_operand.vmem [shape: f32[2,1,1], index: 3, kind: output, shape index: {0}]
  %s4 = inlined_call_operand.hbm [shape: s16[2,16,128], index: 4, kind: output, shape index: {1}]
  %5 = xla_tuple %s3, %s4
  %s6 = sld [smem:[#allocation0]]
  $region61: #{tpu_custom_call.1} parent=0
    _
  %s8 = ssub.s32 1, %s6
  %s9 = scalar_select 0, %s8, %s6
  $region1: #{tpu_custom_call.1} parent=0
    #allocation2 [shape = 'u8[16384]{0}', space=vmem, size = 0x4000, scoped, tag = 'input window, operand 0']
    #allocation3 [shape = 's32[2]{0}', space=sflag, size = 0x8, scoped, tag = 'scoped memory for tpu_custom_call.1']
    #allocation4 [shape = 's32[2]{0}', space=sflag, size = 0x8, scoped, tag = 'scoped memory for tpu_custom_call.1']
    #allocation5 [shape = 'u8[32768]{0}', space=vmem, size = 0x8000, scoped, tag = 'input window, operand 1']
    #allocation6 [shape = 's32[2]{0}', space=sflag, size = 0x8, scoped, tag = 'scoped memory for tpu_custom_call.1']
    #allocation7 [shape = 'u8[8192]{0}', space=vmem, size = 0x2000, scoped, tag = 'output window, operand 1']
    %10 = vsyncpa [#allocation3], 0
    %s11 = scalar_lea.sflag [#allocation3], 1
    %12 = vsyncpa %s11, 0
    %13 = vsyncpa [#allocation6], 0
    %s14 = scalar_lea.sflag [#allocation6], 1
    %15 = vsyncpa %s14, 0
    %16 = vsyncpa [#allocation4], 0
    %s17 = scalar_lea.sflag [#allocation4], 1
    %18 = vsyncpa %s17, 0
    loop: start=0, step=1, limit=4
    $region2: #{tpu_custom_call.1} parent=1 // loop_pre_header
      _
    $region3: #{tpu_custom_call.1} parent=1 // loop_header
      %s20 = sphi 0, %s24
      %p21 = scmp.ge.s32.totalorder %s20, 4
      %s30 = sphi 0, %s32
      %s33 = sphi 0, %s30
      %s34 = sphi 0, %s33
      %s50 = sphi 0, %s34
      %s56 = sphi 0, %s58
      %s59 = sphi 0, %s56
      %s60 = sphi 0, %s59
      %s76 = sphi 0, %s60
      %s80 = sphi 0, %s80
      %s82 = sphi 0, %s80
      %s83 = sphi 0, %s82
      %s97 = sphi 0, %s83
      %s103 = sphi 0, %s105
      %s106 = sphi 0, %s103
      %s107 = sphi 0, %s106
      %s123 = sphi 0, %s107
      %s129 = sphi 0, %s131
      %s132 = sphi 0, %s129
      %s133 = sphi 0, %s132
      %s149 = sphi 0, %s133
    $region4: #{tpu_custom_call.1} parent=1 // loop_header_branch
      %23 = sbr.rel (%p21) target = $region8
    $region5: #{tpu_custom_call.1} parent=1 // loop_body
      %s25 = ssub.s32 %s20, 1
      %s26 = ssub.s32 %s20, 2
      %s27 = sadd.s32 %s20, 1
      %s28 = ssub.s32 %s20, %s27
      %p29 = scmp.eq.s32.totalorder %s28, 0
      %s31 = sadd.s32 %s30, 1
      %s32 = scalar_select %p29, %s30, %s31
      %p35 = pneg %p29
      %p36 = scmp.eq.s32.totalorder %s20, 1
      %p37 = por %p35, %p36
      %p38 = scmp.ne.s32.totalorder %s30, %s33
      %p39 = scmp.eq.s32.totalorder %s20, 0
      %p40 = por %p38, %p39
      %p41 = scmp.ne.s32.totalorder %s30, %s33
      %p42 = scmp.eq.s32.totalorder %s25, 1
      %p43 = por %p41, %p42
      %p44 = scmp.ne.s32.totalorder %s33, %s34
      %p45 = scmp.eq.s32.totalorder %s25, 0
      %p46 = por %p44, %p45
      %p47 = scmp.ne.s32.totalorder %s33, %s34
      %p48 = scmp.eq.s32.totalorder %s26, 1
      %p49 = por %p47, %p48
      %p51 = scmp.ne.s32.totalorder %s34, %s50
      %p52 = scmp.eq.s32.totalorder %s26, 0
      %p53 = por %p51, %p52
      %s54 = ssub.s32 %s20, %s27
      %p55 = scmp.eq.s32.totalorder %s54, 0
      %s57 = sadd.s32 %s56, 1
      %s58 = scalar_select %p55, %s56, %s57
      %p61 = pneg %p55
      %p62 = scmp.eq.s32.totalorder %s20, 1
      %p63 = por %p61, %p62
      %p64 = scmp.ne.s32.totalorder %s56, %s59
      %p65 = scmp.eq.s32.totalorder %s20, 0
      %p66 = por %p64, %p65
      %p67 = scmp.ne.s32.totalorder %s56, %s59
      %p68 = scmp.eq.s32.totalorder %s25, 1
      %p69 = por %p67, %p68
      %p70 = scmp.ne.s32.totalorder %s59, %s60
      %p71 = scmp.eq.s32.totalorder %s25, 0
      %p72 = por %p70, %p71
      %p73 = scmp.ne.s32.totalorder %s59, %s60
      %p74 = scmp.eq.s32.totalorder %s26, 1
      %p75 = por %p73, %p74
      %p77 = scmp.ne.s32.totalorder %s60, %s76
      %p78 = scmp.eq.s32.totalorder %s26, 0
      %p79 = por %p77, %p78
      %s81 = sadd.s32 %s80, 1
      %p84 = scmp.eq.s32.totalorder %s20, 1
      %p85 = scmp.ne.s32.totalorder %s80, %s82
      %p86 = scmp.eq.s32.totalorder %s20, 0
      %p87 = por %p85, %p86
      %p88 = scmp.ne.s32.totalorder %s80, %s82
      %p89 = scmp.eq.s32.totalorder %s25, 1
      %p90 = por %p88, %p89
      %p91 = scmp.ne.s32.totalorder %s82, %s83
      %p92 = scmp.eq.s32.totalorder %s25, 0
      %p93 = por %p91, %p92
      %p94 = scmp.ne.s32.totalorder %s82, %s83
      %p95 = scmp.eq.s32.totalorder %s26, 1
      %p96 = por %p94, %p95
      %p98 = scmp.ne.s32.totalorder %s83, %s97
      %p99 = scmp.eq.s32.totalorder %s26, 0
      %p100 = por %p98, %p99
      %s101 = ssub.s32 %s20, %s27
      %p102 = scmp.eq.s32.totalorder %s101, 0
      %s104 = sadd.s32 %s103, 1
      %s105 = scalar_select %p102, %s103, %s104
      %p108 = pneg %p102
      %p109 = scmp.eq.s32.totalorder %s20, 1
      %p110 = por %p108, %p109
      %p111 = scmp.ne.s32.totalorder %s103, %s106
      %p112 = scmp.eq.s32.totalorder %s20, 0
      %p113 = por %p111, %p112
      %p114 = scmp.ne.s32.totalorder %s103, %s106
      %p115 = scmp.eq.s32.totalorder %s25, 1
      %p116 = por %p114, %p115
      %p117 = scmp.ne.s32.totalorder %s106, %s107
      %p118 = scmp.eq.s32.totalorder %s25, 0
      %p119 = por %p117, %p118
      %p120 = scmp.ne.s32.totalorder %s106, %s107
      %p121 = scmp.eq.s32.totalorder %s26, 1
      %p122 = por %p120, %p121
      %p124 = scmp.ne.s32.totalorder %s107, %s123
      %p125 = scmp.eq.s32.totalorder %s26, 0
      %p126 = por %p124, %p125
      %s127 = ssub.s32 %s20, %s27
      %p128 = scmp.eq.s32.totalorder %s127, 0
      %s130 = sadd.s32 %s129, 1
      %s131 = scalar_select %p128, %s129, %s130
      %p134 = pneg %p128
      %p135 = scmp.eq.s32.totalorder %s20, 1
      %p136 = por %p134, %p135
      %p137 = scmp.ne.s32.totalorder %s129, %s132
      %p138 = scmp.eq.s32.totalorder %s20, 0
      %p139 = por %p137, %p138
      %p140 = scmp.ne.s32.totalorder %s129, %s132
      %p141 = scmp.eq.s32.totalorder %s25, 1
      %p142 = por %p140, %p141
      %p143 = scmp.ne.s32.totalorder %s132, %s133
      %p144 = scmp.eq.s32.totalorder %s25, 0
      %p145 = por %p143, %p144
      %p146 = scmp.ne.s32.totalorder %s132, %s133
      %p147 = scmp.eq.s32.totalorder %s26, 1
      %p148 = por %p146, %p147
      %p150 = scmp.ne.s32.totalorder %s133, %s149
      %p151 = scmp.eq.s32.totalorder %s26, 0
      %p152 = por %p150, %p151
      %p153 = scmp.le.s32.totalorder 1, %s20
      %p154 = scmp.lt.s32.totalorder %s20, 3
      %p155 = pnand %p153, %p154
      %p156 = pneg %p155
      // Predicated region
      $region9: #{tpu_custom_call.1} parent=5 // pred_check
        _
      $region10: #{tpu_custom_call.1} parent=5 // pred_check_branch
        %158 = sbr.rel (%p155) target = $region12
      $region11: #{tpu_custom_call.1} parent=5 // pred_region
        %s159 = ssub.s32 %s20, 1
        // Predicated region
        $region13: #{tpu_custom_call.1} parent=11 // pred_check
          %p160 = pneg %p93
        $region14: #{tpu_custom_call.1} parent=11 // pred_check_branch
          %162 = sbr.rel (%p160) target = $region16
        $region15: #{tpu_custom_call.1} parent=11 // pred_region
          _
        $region16: #{tpu_custom_call.1} parent=11 // pred_fallthru
          _
      $region12: #{tpu_custom_call.1} parent=5 // pred_fallthru
        _
      %p163 = scmp.lt.s32.totalorder %s20, 2
      // Predicated region
      $region17: #{tpu_custom_call.1} parent=5 // pred_check
        %p164 = pneg %p163
      $region18: #{tpu_custom_call.1} parent=5 // pred_check_branch
        %166 = sbr.rel (%p164) target = $region20
      $region19: #{tpu_custom_call.1} parent=5 // pred_region
        // Predicated region
        $region21: #{tpu_custom_call.1} parent=19 // pred_check
          %p167 = pneg %p40
        $region22: #{tpu_custom_call.1} parent=19 // pred_check_branch
          %169 = sbr.rel (%p167) target = $region24
        $region23: #{tpu_custom_call.1} parent=19 // pred_region
          %s170 = sand.u32 %s30, 1
          %s171 = scalar_lea.sflag [#allocation3], %s170
          %s172 = sand.u32 %s30, 1
          %s173 = smul.addr %s172, 16
          %s174 = scalar_lea.vmem [#allocation2], %s173
          %176 = vsyncadd %s171, 0
          %s177 = smul.addr %s20, 2
          %s178 = smul.addr %s177, 8
          %s179 = scalar_lea.hbm %s0, %s178
          %s180 = sshll.u32 %s179, 4
          %s181 = int_to_ptr.hbm [resolvable:$true] %s180
          %s182 = sshll.u32 %s174, 4
          %s183 = int_to_ptr.vmem [resolvable:$true] %s182
          %188 = dma.hbm_to_vmem [thread:$0]  %s181, 256, %s183, %s171, 128, 128, 8
        $region24: #{tpu_custom_call.1} parent=19 // pred_fallthru
          _
        // Predicated region
        $region25: #{tpu_custom_call.1} parent=19 // pred_check
          %p189 = pneg %p66
        $region26: #{tpu_custom_call.1} parent=19 // pred_check_branch
          %191 = sbr.rel (%p189) target = $region28
        $region27: #{tpu_custom_call.1} parent=19 // pred_region
          %s192 = sand.u32 %s56, 1
          %s193 = scalar_lea.sflag [#allocation6], %s192
          %s194 = sand.u32 %s56, 1
          %s195 = smul.addr %s194, 32
          %s196 = scalar_lea.vmem [#allocation5], %s195
          %198 = vsyncadd %s193, 0
          %s199 = smul.addr %s20, 4
          %s200 = smul.addr %s199, 8
          %s201 = scalar_lea.hbm %s1, %s200
          %s202 = sshll.u32 %s201, 4
          %s203 = int_to_ptr.hbm [resolvable:$true] %s202
          %s204 = sshll.u32 %s196, 4
          %s205 = int_to_ptr.vmem [resolvable:$true] %s204
          %210 = dma.hbm_to_vmem [thread:$0]  %s203, 512, %s205, %s193, 128, 128, 8
        $region28: #{tpu_custom_call.1} parent=19 // pred_fallthru
          _
      $region20: #{tpu_custom_call.1} parent=5 // pred_fallthru
        _
      %p211 = scmp.le.s32.totalorder 1, %s20
      %p212 = scmp.lt.s32.totalorder %s20, 3
      %p213 = pnand %p211, %p212
      %p214 = pneg %p213
      // Predicated region
      $region29: #{tpu_custom_call.1} parent=5 // pred_check
        _
      $region30: #{tpu_custom_call.1} parent=5 // pred_check_branch
        %216 = sbr.rel (%p213) target = $region32
      $region31: #{tpu_custom_call.1} parent=5 // pred_region
        %s217 = ssub.s32 %s20, 1
        %s218 = sand.u32 %s33, 1
        %s219 = scalar_lea.sflag [#allocation3], %s218
        %s220 = sand.u32 %s33, 1
        %s221 = smul.addr %s220, 16
        %s222 = scalar_lea.vmem [#allocation2], %s221
        // Predicated region
        $region33: #{tpu_custom_call.1} parent=31 // pred_check
          %p223 = pneg %p46
        $region34: #{tpu_custom_call.1} parent=31 // pred_check_branch
          %225 = sbr.rel (%p223) target = $region36
        $region35: #{tpu_custom_call.1} parent=31 // pred_region
          %227 = dma.done %s219, 256
        $region36: #{tpu_custom_call.1} parent=31 // pred_fallthru
          _
        %s228 = sand.u32 %s59, 1
        %s229 = scalar_lea.sflag [#allocation6], %s228
        %s230 = sand.u32 %s59, 1
        %s231 = smul.addr %s230, 32
        %s232 = scalar_lea.vmem [#allocation5], %s231
        // Predicated region
        $region37: #{tpu_custom_call.1} parent=31 // pred_check
          %p233 = pneg %p72
        $region38: #{tpu_custom_call.1} parent=31 // pred_check_branch
          %235 = sbr.rel (%p233) target = $region40
        $region39: #{tpu_custom_call.1} parent=31 // pred_region
          %237 = dma.done %s229, 512
        $region40: #{tpu_custom_call.1} parent=31 // pred_fallthru
          _
        %s238 = sand.u32 %s33, 1
        %s239 = scalar_lea.sflag [#allocation3], %s238
        %s240 = sand.u32 %s33, 1
        %s241 = smul.addr %s240, 16
        %s242 = scalar_lea.vmem [#allocation2], %s241
        %p243 = pneg %p46
        %p244 = pneg %p43
        %s245 = sand.u32 %s59, 1
        %s246 = scalar_lea.sflag [#allocation6], %s245
        %s247 = sand.u32 %s59, 1
        %s248 = smul.addr %s247, 32
        %s249 = scalar_lea.vmem [#allocation5], %s248
        %p250 = pneg %p72
        %p251 = pneg %p69
        %p252 = pneg %p93
        %p253 = pneg %p90
        %p254 = pneg %p119
        %p255 = pneg %p116
        %p256 = scmp.lt.s32.totalorder %s25, 1
        %s257 = scalar_select %p256, %s25, 1
        %s258 = scalar_lea.vmem %s3, %s257
        %p259 = pneg %p145
        %p260 = pneg %p142
        %s261 = sand.u32 %s132, 1
        %s262 = scalar_lea.sflag [#allocation4], %s261
        %s263 = sand.u32 %s132, 1
        %s264 = smul.addr %s263, 8
        %s265 = scalar_lea.vmem [#allocation7], %s264
        %p266 = scmp.lt.s32.totalorder %s25, 1
        %s267 = scalar_select %p266, %s25, 1
        %s268 = scalar_lea.vmem %s3, %s267
        %v270 = vld [vmem:[%s222] sm:$0xff]
        %v271 = vld [vmem:[%s222 + $0x8] sm:$0xff]
        %v272 = vld [vmem:[%s232] sm:$0xff]
        %v273 = vld [vmem:[%s232 + $0x8] sm:$0xff]
        %v274 = vld [vmem:[%s232 + $0x10] sm:$0xff]
        %v275 = vld [vmem:[%s232 + $0x18] sm:$0xff]
        %v276 = vld [vmem:[%s2] sm:$0xff]
        %v277 = vld [vmem:[%s2 + $0x8] sm:$0xff]
        %v278 = vmul.f32 %v270, %v270
        %v279 = vmul.f32 %v271, %v271
        %vm280 = vcmask 261120
        %v281 = vsel %vm280, %v278, 0.0
        %282 = vadd.xlane.f32.xlu0 %v281
        %v283 = vpop.xlane.xlu0 %282
        %v284 = vsel %vm280, %v279, 0.0
        %285 = vadd.xlane.f32.xlu0 %v284
        %v286 = vpop.xlane.xlu0 %285
        %v287 = vmul.f32 %v272, %v272
        %v288 = vmul.f32 %v273, %v273
        %v289 = vmul.f32 %v274, %v274
        %v290 = vmul.f32 %v275, %v275
        %v291 = vsel %vm280, %v287, 0.0
        %v292 = vsel %vm280, %v288, 0.0
        %v293 = vadd.f32 %v291, %v292
        %v294 = vsel %vm280, %v289, 0.0
        %v295 = vadd.f32 %v293, %v294
        %v296 = vsel %vm280, %v290, 0.0
        %v297 = vadd.f32 %v295, %v296
        %v298 = vrot.slane %v297, 4
        %v299 = vadd.f32 %v297, %v298
        %v300 = vrot.slane %v299, 2
        %v301 = vadd.f32 %v299, %v300
        %v302 = vrot.slane %v301, 1
        %v303 = vadd.f32 %v301, %v302
        %v304 = vpack.c.bf16 %v270, %v270
        %v305 = vpack.c.bf16 %v271, %v271
        %v306 = vpack.c.bf16 %v272, %v272
        %v307 = vpack.c.bf16 %v273, %v273
        %v308 = vpack.c.bf16 %v274, %v274
        %v309 = vpack.c.bf16 %v275, %v275
        %v310 = vunpack.c.l.bf16 %v304
        %v311 = vunpack.c.l.bf16 %v305
        %v312 = vsub.f32 %v270, %v310
        %v313 = vsub.f32 %v271, %v311
        %v314 = vpack.c.bf16 %v312, %v312
        %v315 = vpack.c.bf16 %v313, %v313
        %v316 = vunpack.c.l.bf16 %v306
        %v317 = vunpack.c.l.bf16 %v307
        %v318 = vunpack.c.l.bf16 %v308
        %v319 = vunpack.c.l.bf16 %v309
        %v320 = vsub.f32 %v272, %v316
        %v321 = vsub.f32 %v273, %v317
        %v322 = vsub.f32 %v274, %v318
        %v323 = vsub.f32 %v275, %v319
        %v324 = vpack.c.bf16 %v320, %v320
        %v325 = vpack.c.bf16 %v321, %v321
        %v326 = vpack.c.bf16 %v322, %v322
        %v327 = vpack.c.bf16 %v323, %v323
        %v330 = vunpack.c.l.b16 %v304
        %v331 = vunpack.c.l.b16 %v305
        %v332 = vpack.c.b16 %v331, %v330
        %v337 = vunpack.c.l.b16 %v324
        %v338 = vunpack.c.l.b16 %v325
        %v339 = vunpack.c.l.b16 %v326
        %v340 = vunpack.c.l.b16 %v327
        %v341 = vpack.c.b16 %v338, %v337
        %v342 = vpack.c.b16 %v340, %v339
        %v346 = vsel %vm280, %v332, 0
        %348 = vmatpush.bf16.msra.mxu0 0
        %349 = vmatpush.bf16.msra.mxu0 0
        %350 = vmatpush.bf16.msra.mxu0 0
        %351 = vmatpush.bf16.msra.mxu0 0
        %352 = vmatpush.bf16.msra.mxu0 0
        %353 = vmatpush.bf16.msra.mxu0 0
        %354 = vmatpush.bf16.msra.mxu0 %v342
        %355 = vmatpush.bf16.msra.mxu0 %v341
        %356 = vmatmul.bf16.gmra.mxu0 %v346
        %v357 = vpop.f32.mrf.mxu0
        %v358 = vadd.f32 0.0, %v357
        %v359 = vpop.f32.mrf.mxu0
        %v360 = vadd.f32 0.0, %v359
        %361 = vdwg.mxu0
        %v366 = vunpack.c.l.b16 %v306
        %v367 = vunpack.c.l.b16 %v307
        %v368 = vunpack.c.l.b16 %v308
        %v369 = vunpack.c.l.b16 %v309
        %v370 = vpack.c.b16 %v367, %v366
        %v371 = vpack.c.b16 %v369, %v368
        %374 = vmatpush.bf16.msra.mxu0 0
        %375 = vmatpush.bf16.msra.mxu0 0
        %376 = vmatpush.bf16.msra.mxu0 0
        %377 = vmatpush.bf16.msra.mxu0 0
        %378 = vmatpush.bf16.msra.mxu0 0
        %379 = vmatpush.bf16.msra.mxu0 0
        %380 = vmatpush.bf16.msra.mxu0 %v371
        %381 = vmatpush.bf16.msra.mxu0 %v370
        %382 = vmatmul.bf16.gmra.mxu0 %v346
        %v383 = vpop.f32.mrf.mxu0
        %v384 = vadd.f32 %v358, %v383
        %v385 = vpop.f32.mrf.mxu0
        %v386 = vadd.f32 %v360, %v385
        %387 = vdwg.mxu0
        %v390 = vunpack.c.l.b16 %v314
        %v391 = vunpack.c.l.b16 %v315
        %v392 = vpack.c.b16 %v391, %v390
        %v394 = vsel %vm280, %v392, 0
        %396 = vmatpush.bf16.msra.mxu0 0
        %397 = vmatpush.bf16.msra.mxu0 0
        %398 = vmatpush.bf16.msra.mxu0 0
        %399 = vmatpush.bf16.msra.mxu0 0
        %400 = vmatpush.bf16.msra.mxu0 0
        %401 = vmatpush.bf16.msra.mxu0 0
        %402 = vmatpush.bf16.msra.mxu0 %v371
        %403 = vmatpush.bf16.msra.mxu0 %v370
        %404 = vmatmul.bf16.gmra.mxu0 %v394
        %v405 = vpop.f32.mrf.mxu0
        %v406 = vadd.f32 0.0, %v405
        %v407 = vpop.f32.mrf.mxu0
        %v408 = vadd.f32 0.0, %v407
        %409 = vdwg.mxu0
        %v410 = vadd.f32 %v384, %v406
        %v411 = vadd.f32 %v386, %v408
        %v412 = vadd.f32 %v283, %v303
        %v413 = vadd.f32 %v286, %v303
        %v414 = vmul.f32 %v410, 2.0
        %v415 = vmul.f32 %v411, 2.0
        %v416 = vsub.f32 %v412, %v414
        %v417 = vsub.f32 %v413, %v415
        %v418 = vlaneseq
        %v419 = vand.u32 %v418, 127
        %420 = vset.pattern.permute.xlu0 0
        %421 = vperm.xlu0 %420, %v276
        %v422 = vpop.permute.xlu0 %421
        %423 = vset.pattern.permute.xlu0 0
        %424 = vperm.xlu0 %423, %v277
        %v425 = vpop.permute.xlu0 %424
        %vm426 = vcmp.eq.s32.totalorder %v419, %v422
        %vm427 = vcmp.eq.s32.totalorder %v419, %v425
        %v428 = vmul.f32 %v416, -10.0
        %v429 = vmul.f32 %v417, -10.0
        %v430 = vmul.f32 %v428, 1.442695
        %v431 = vpow.pop %v430
        %v432 = vmul.f32 %v429, 1.442695
        %v433 = vpow.pop %v432
        %v434 = vsel %vm426, 0.0, %v431
        %v435 = vsel %vm427, 0.0, %v433
        %v436 = vsel %vm280, %v434, 0.0
        %437 = vadd.xlane.f32.xlu0 %v436
        %v438 = vpop.xlane.xlu0 %437
        %v439 = vsel %vm280, %v435, 0.0
        %440 = vadd.xlane.f32.xlu0 %v439
        %v441 = vpop.xlane.xlu0 %440
        %v442 = vlog2.pop %v438
        %v443 = vmul.f32 %v442, 0.6931472
        %v444 = vlog2.pop %v441
        %v445 = vmul.f32 %v444, 0.6931472
        %v448 = vshra.s32 %v416, 31
        %v449 = vshra.s32 %v417, 31
        %v450 = vand.u32 %v448, 2147483647
        %v451 = vand.u32 %v449, 2147483647
        %v452 = vxor.u32 %v416, %v450
        %v453 = vxor.u32 %v417, %v451
        %v454 = vand.u32 %v452, 4294967264
        %v455 = vand.u32 %v453, 4294967264
        %v456 = vor.u32 %v454, %v419
        %v457 = vor.u32 %v455, %v419
        %v458 = vsel %vm426, 2147483647, %v456
        %v459 = vsel %vm427, 2147483647, %v457
        %v460 = vsel %vm280, %v458, 2147483647
        %v461 = vand.u32 %v460, 65535
        %v462 = vshra.s32 %v460, 16
        %v463 = vcvt.s32.f32 %v461
        %v464 = vcvt.s32.f32 %v462
        %465 = vmin.xlane.f32.xlu0 %v464
        %v466 = vpop.xlane.xlu0 %465
        %vm467 = vcmp.eq.f32.partialorder %v464, %v466
        %v468 = vsel %vm467, %v463, inf
        %469 = vmin.xlane.f32.xlu0 %v468
        %v470 = vpop.xlane.xlu0 %469
        %v471 = vcvt.f32.s32 %v470
        %v472 = vcvt.f32.s32 %v466
        %v473 = vshll.u32 %v472, 16
        %v474 = vadd.s32 %v473, %v471
        %v475 = vsel %vm280, %v459, 2147483647
        %v476 = vand.u32 %v475, 65535
        %v477 = vshra.s32 %v475, 16
        %v478 = vcvt.s32.f32 %v476
        %v479 = vcvt.s32.f32 %v477
        %480 = vmin.xlane.f32.xlu0 %v479
        %v481 = vpop.xlane.xlu0 %480
        %vm482 = vcmp.eq.f32.partialorder %v479, %v481
        %v483 = vsel %vm482, %v478, inf
        %484 = vmin.xlane.f32.xlu0 %v483
        %v485 = vpop.xlane.xlu0 %484
        %v486 = vcvt.f32.s32 %v485
        %v487 = vcvt.f32.s32 %v481
        %v488 = vshll.u32 %v487, 16
        %v489 = vadd.s32 %v488, %v486
        %v490 = vand.u32 %v474, 31
        %v491 = vand.u32 %v489, 31
        %v492 = vand.u32 %v474, 4294967264
        %v493 = vand.u32 %v489, 4294967264
        %v494 = vshra.s32 %v492, 31
        %v495 = vshra.s32 %v493, 31
        %v496 = vand.u32 %v494, 2147483647
        %v497 = vand.u32 %v495, 2147483647
        %v498 = vxor.u32 %v492, %v496
        %v499 = vxor.u32 %v493, %v497
        %v502 = vmul.f32 %v498, -10.0
        %v503 = vmul.f32 %v499, -10.0
        %v504 = vmul.f32 %v502, 1.442695
        %v505 = vpow.pop %v504
        %v506 = vmul.f32 %v503, 1.442695
        %v507 = vpow.pop %v506
        %v508 = vadd.f32 %v505, 0.0
        %v509 = vadd.f32 %v507, 0.0
        %vm510 = vcmp.gt.s32.totalorder %v490, %v276
        %vm511 = vcmp.gt.s32.totalorder %v491, %v277
        %v512 = vsel %vm510, 1, 0
        %v513 = vsel %vm511, 1, 0
        %v514 = vsub.s32 %v490, %v512
        %v515 = vsub.s32 %v491, %v513
        %vm516 = vcmp.eq.s32.totalorder %v419, 0
        %517 = vset.pattern.permute.xlu0 0
        %518 = vperm.xlu0 %517, %v514
        %v519 = vpop.permute.xlu0 %518
        %520 = vset.pattern.permute.xlu0 0
        %521 = vperm.xlu0 %520, %v515
        %v522 = vpop.permute.xlu0 %521
        %v523 = vsel %vm516, %v519, 0
        %v524 = vsel %vm516, %v522, 0
        %vm525 = vcmp.eq.s32.totalorder %v458, %v474
        %vm526 = vcmp.eq.s32.totalorder %v459, %v489
        %v527 = vsel %vm525, 2147483647, %v458
        %v528 = vsel %vm526, 2147483647, %v459
        %v529 = vsel %vm280, %v527, 2147483647
        %v530 = vand.u32 %v529, 65535
        %v531 = vshra.s32 %v529, 16
        %v532 = vcvt.s32.f32 %v530
        %v533 = vcvt.s32.f32 %v531
        %534 = vmin.xlane.f32.xlu0 %v533
        %v535 = vpop.xlane.xlu0 %534
        %vm536 = vcmp.eq.f32.partialorder %v533, %v535
        %v537 = vsel %vm536, %v532, inf
        %538 = vmin.xlane.f32.xlu0 %v537
        %v539 = vpop.xlane.xlu0 %538
        %v540 = vcvt.f32.s32 %v539
        %v541 = vcvt.f32.s32 %v535
        %v542 = vshll.u32 %v541, 16
        %v543 = vadd.s32 %v542, %v540
        %v544 = vsel %vm280, %v528, 2147483647
        %v545 = vand.u32 %v544, 65535
        %v546 = vshra.s32 %v544, 16
        %v547 = vcvt.s32.f32 %v545
        %v548 = vcvt.s32.f32 %v546
        %549 = vmin.xlane.f32.xlu0 %v548
        %v550 = vpop.xlane.xlu0 %549
        %vm551 = vcmp.eq.f32.partialorder %v548, %v550
        %v552 = vsel %vm551, %v547, inf
        %553 = vmin.xlane.f32.xlu0 %v552
        %v554 = vpop.xlane.xlu0 %553
        %v555 = vcvt.f32.s32 %v554
        %v556 = vcvt.f32.s32 %v550
        %v557 = vshll.u32 %v556, 16
        %v558 = vadd.s32 %v557, %v555
        %v559 = vand.u32 %v543, 31
        %v560 = vand.u32 %v558, 31
        %v561 = vand.u32 %v543, 4294967264
        %v562 = vand.u32 %v558, 4294967264
        %v563 = vshra.s32 %v561, 31
        %v564 = vshra.s32 %v562, 31
        %v565 = vand.u32 %v563, 2147483647
        %v566 = vand.u32 %v564, 2147483647
        %v567 = vxor.u32 %v561, %v565
        %v568 = vxor.u32 %v562, %v566
        %v571 = vmul.f32 %v567, -10.0
        %v572 = vmul.f32 %v568, -10.0
        %v573 = vmul.f32 %v571, 1.442695
        %v574 = vpow.pop %v573
        %v575 = vmul.f32 %v572, 1.442695
        %v576 = vpow.pop %v575
        %v577 = vadd.f32 %v508, %v574
        %v578 = vadd.f32 %v509, %v576
        %vm579 = vcmp.gt.s32.totalorder %v559, %v276
        %vm580 = vcmp.gt.s32.totalorder %v560, %v277
        %v581 = vsel %vm579, 1, 0
        %v582 = vsel %vm580, 1, 0
        %v583 = vsub.s32 %v559, %v581
        %v584 = vsub.s32 %v560, %v582
        %vm585 = vcmp.eq.s32.totalorder %v419, 1
        %586 = vset.pattern.permute.xlu0 0
        %587 = vperm.xlu0 %586, %v583
        %v588 = vpop.permute.xlu0 %587
        %589 = vset.pattern.permute.xlu0 0
        %590 = vperm.xlu0 %589, %v584
        %v591 = vpop.permute.xlu0 %590
        %v592 = vsel %vm585, %v588, %v523
        %v593 = vsel %vm585, %v591, %v524
        %vm594 = vcmp.eq.s32.totalorder %v527, %v543
        %vm595 = vcmp.eq.s32.totalorder %v528, %v558
        %v596 = vsel %vm594, 2147483647, %v527
        %v597 = vsel %vm595, 2147483647, %v528
        %v598 = vsel %vm280, %v596, 2147483647
        %v599 = vand.u32 %v598, 65535
        %v600 = vshra.s32 %v598, 16
        %v601 = vcvt.s32.f32 %v599
        %v602 = vcvt.s32.f32 %v600
        %603 = vmin.xlane.f32.xlu0 %v602
        %v604 = vpop.xlane.xlu0 %603
        %vm605 = vcmp.eq.f32.partialorder %v602, %v604
        %v606 = vsel %vm605, %v601, inf
        %607 = vmin.xlane.f32.xlu0 %v606
        %v608 = vpop.xlane.xlu0 %607
        %v609 = vcvt.f32.s32 %v608
        %v610 = vcvt.f32.s32 %v604
        %v611 = vshll.u32 %v610, 16
        %v612 = vadd.s32 %v611, %v609
        %v613 = vsel %vm280, %v597, 2147483647
        %v614 = vand.u32 %v613, 65535
        %v615 = vshra.s32 %v613, 16
        %v616 = vcvt.s32.f32 %v614
        %v617 = vcvt.s32.f32 %v615
        %618 = vmin.xlane.f32.xlu0 %v617
        %v619 = vpop.xlane.xlu0 %618
        %vm620 = vcmp.eq.f32.partialorder %v617, %v619
        %v621 = vsel %vm620, %v616, inf
        %622 = vmin.xlane.f32.xlu0 %v621
        %v623 = vpop.xlane.xlu0 %622
        %v624 = vcvt.f32.s32 %v623
        %v625 = vcvt.f32.s32 %v619
        %v626 = vshll.u32 %v625, 16
        %v627 = vadd.s32 %v626, %v624
        %v628 = vand.u32 %v612, 31
        %v629 = vand.u32 %v627, 31
        %v630 = vand.u32 %v612, 4294967264
        %v631 = vand.u32 %v627, 4294967264
        %v632 = vshra.s32 %v630, 31
        %v633 = vshra.s32 %v631, 31
        %v634 = vand.u32 %v632, 2147483647
        %v635 = vand.u32 %v633, 2147483647
        %v636 = vxor.u32 %v630, %v634
        %v637 = vxor.u32 %v631, %v635
        %v640 = vmul.f32 %v636, -10.0
        %v641 = vmul.f32 %v637, -10.0
        %v642 = vmul.f32 %v640, 1.442695
        %v643 = vpow.pop %v642
        %v644 = vmul.f32 %v641, 1.442695
        %v645 = vpow.pop %v644
        %v646 = vadd.f32 %v577, %v643
        %v647 = vadd.f32 %v578, %v645
        %vm648 = vcmp.gt.s32.totalorder %v628, %v276
        %vm649 = vcmp.gt.s32.totalorder %v629, %v277
        %v650 = vsel %vm648, 1, 0
        %v651 = vsel %vm649, 1, 0
        %v652 = vsub.s32 %v628, %v650
        %v653 = vsub.s32 %v629, %v651
        %vm654 = vcmp.eq.s32.totalorder %v419, 2
        %655 = vset.pattern.permute.xlu0 0
        %656 = vperm.xlu0 %655, %v652
        %v657 = vpop.permute.xlu0 %656
        %658 = vset.pattern.permute.xlu0 0
        %659 = vperm.xlu0 %658, %v653
        %v660 = vpop.permute.xlu0 %659
        %v661 = vsel %vm654, %v657, %v592
        %v662 = vsel %vm654, %v660, %v593
        %vm663 = vcmp.eq.s32.totalorder %v596, %v612
        %vm664 = vcmp.eq.s32.totalorder %v597, %v627
        %v665 = vsel %vm663, 2147483647, %v596
        %v666 = vsel %vm664, 2147483647, %v597
        %v667 = vsel %vm280, %v665, 2147483647
        %v668 = vand.u32 %v667, 65535
        %v669 = vshra.s32 %v667, 16
        %v670 = vcvt.s32.f32 %v668
        %v671 = vcvt.s32.f32 %v669
        %672 = vmin.xlane.f32.xlu0 %v671
        %v673 = vpop.xlane.xlu0 %672
        %vm674 = vcmp.eq.f32.partialorder %v671, %v673
        %v675 = vsel %vm674, %v670, inf
        %676 = vmin.xlane.f32.xlu0 %v675
        %v677 = vpop.xlane.xlu0 %676
        %v678 = vcvt.f32.s32 %v677
        %v679 = vcvt.f32.s32 %v673
        %v680 = vshll.u32 %v679, 16
        %v681 = vadd.s32 %v680, %v678
        %v682 = vsel %vm280, %v666, 2147483647
        %v683 = vand.u32 %v682, 65535
        %v684 = vshra.s32 %v682, 16
        %v685 = vcvt.s32.f32 %v683
        %v686 = vcvt.s32.f32 %v684
        %687 = vmin.xlane.f32.xlu0 %v686
        %v688 = vpop.xlane.xlu0 %687
        %vm689 = vcmp.eq.f32.partialorder %v686, %v688
        %v690 = vsel %vm689, %v685, inf
        %691 = vmin.xlane.f32.xlu0 %v690
        %v692 = vpop.xlane.xlu0 %691
        %v693 = vcvt.f32.s32 %v692
        %v694 = vcvt.f32.s32 %v688
        %v695 = vshll.u32 %v694, 16
        %v696 = vadd.s32 %v695, %v693
        %v697 = vand.u32 %v681, 31
        %v698 = vand.u32 %v696, 31
        %v699 = vand.u32 %v681, 4294967264
        %v700 = vand.u32 %v696, 4294967264
        %v701 = vshra.s32 %v699, 31
        %v702 = vshra.s32 %v700, 31
        %v703 = vand.u32 %v701, 2147483647
        %v704 = vand.u32 %v702, 2147483647
        %v705 = vxor.u32 %v699, %v703
        %v706 = vxor.u32 %v700, %v704
        %v709 = vmul.f32 %v705, -10.0
        %v710 = vmul.f32 %v706, -10.0
        %v711 = vmul.f32 %v709, 1.442695
        %v712 = vpow.pop %v711
        %v713 = vmul.f32 %v710, 1.442695
        %v714 = vpow.pop %v713
        %v715 = vadd.f32 %v646, %v712
        %v716 = vadd.f32 %v647, %v714
        %vm717 = vcmp.gt.s32.totalorder %v697, %v276
        %vm718 = vcmp.gt.s32.totalorder %v698, %v277
        %v719 = vsel %vm717, 1, 0
        %v720 = vsel %vm718, 1, 0
        %v721 = vsub.s32 %v697, %v719
        %v722 = vsub.s32 %v698, %v720
        %vm723 = vcmp.eq.s32.totalorder %v419, 3
        %724 = vset.pattern.permute.xlu0 0
        %725 = vperm.xlu0 %724, %v721
        %v726 = vpop.permute.xlu0 %725
        %727 = vset.pattern.permute.xlu0 0
        %728 = vperm.xlu0 %727, %v722
        %v729 = vpop.permute.xlu0 %728
        %v730 = vsel %vm723, %v726, %v661
        %v731 = vsel %vm723, %v729, %v662
        %vm732 = vcmp.eq.s32.totalorder %v665, %v681
        %vm733 = vcmp.eq.s32.totalorder %v666, %v696
        %v734 = vsel %vm732, 2147483647, %v665
        %v735 = vsel %vm733, 2147483647, %v666
        %v736 = vsel %vm280, %v734, 2147483647
        %v737 = vand.u32 %v736, 65535
        %v738 = vshra.s32 %v736, 16
        %v739 = vcvt.s32.f32 %v737
        %v740 = vcvt.s32.f32 %v738
        %741 = vmin.xlane.f32.xlu0 %v740
        %v742 = vpop.xlane.xlu0 %741
        %vm743 = vcmp.eq.f32.partialorder %v740, %v742
        %v744 = vsel %vm743, %v739, inf
        %745 = vmin.xlane.f32.xlu0 %v744
        %v746 = vpop.xlane.xlu0 %745
        %v747 = vcvt.f32.s32 %v746
        %v748 = vcvt.f32.s32 %v742
        %v749 = vshll.u32 %v748, 16
        %v750 = vadd.s32 %v749, %v747
        %v751 = vsel %vm280, %v735, 2147483647
        %v752 = vand.u32 %v751, 65535
        %v753 = vshra.s32 %v751, 16
        %v754 = vcvt.s32.f32 %v752
        %v755 = vcvt.s32.f32 %v753
        %756 = vmin.xlane.f32.xlu0 %v755
        %v757 = vpop.xlane.xlu0 %756
        %vm758 = vcmp.eq.f32.partialorder %v755, %v757
        %v759 = vsel %vm758, %v754, inf
        %760 = vmin.xlane.f32.xlu0 %v759
        %v761 = vpop.xlane.xlu0 %760
        %v762 = vcvt.f32.s32 %v761
        %v763 = vcvt.f32.s32 %v757
        %v764 = vshll.u32 %v763, 16
        %v765 = vadd.s32 %v764, %v762
        %v766 = vand.u32 %v750, 31
        %v767 = vand.u32 %v765, 31
        %v768 = vand.u32 %v750, 4294967264
        %v769 = vand.u32 %v765, 4294967264
        %v770 = vshra.s32 %v768, 31
        %v771 = vshra.s32 %v769, 31
        %v772 = vand.u32 %v770, 2147483647
        %v773 = vand.u32 %v771, 2147483647
        %v774 = vxor.u32 %v768, %v772
        %v775 = vxor.u32 %v769, %v773
        %v778 = vmul.f32 %v774, -10.0
        %v779 = vmul.f32 %v775, -10.0
        %v780 = vmul.f32 %v778, 1.442695
        %v781 = vpow.pop %v780
        %v782 = vmul.f32 %v779, 1.442695
        %v783 = vpow.pop %v782
        %v784 = vadd.f32 %v715, %v781
        %v785 = vadd.f32 %v716, %v783
        %vm786 = vcmp.gt.s32.totalorder %v766, %v276
        %vm787 = vcmp.gt.s32.totalorder %v767, %v277
        %v788 = vsel %vm786, 1, 0
        %v789 = vsel %vm787, 1, 0
        %v790 = vsub.s32 %v766, %v788
        %v791 = vsub.s32 %v767, %v789
        %vm792 = vcmp.eq.s32.totalorder %v419, 4
        %793 = vset.pattern.permute.xlu0 0
        %794 = vperm.xlu0 %793, %v790
        %v795 = vpop.permute.xlu0 %794
        %796 = vset.pattern.permute.xlu0 0
        %797 = vperm.xlu0 %796, %v791
        %v798 = vpop.permute.xlu0 %797
        %v799 = vsel %vm792, %v795, %v730
        %v800 = vsel %vm792, %v798, %v731
        %vm801 = vcmp.eq.s32.totalorder %v734, %v750
        %vm802 = vcmp.eq.s32.totalorder %v735, %v765
        %v803 = vsel %vm801, 2147483647, %v734
        %v804 = vsel %vm802, 2147483647, %v735
        %v805 = vsel %vm280, %v803, 2147483647
        %v806 = vand.u32 %v805, 65535
        %v807 = vshra.s32 %v805, 16
        %v808 = vcvt.s32.f32 %v806
        %v809 = vcvt.s32.f32 %v807
        %810 = vmin.xlane.f32.xlu0 %v809
        %v811 = vpop.xlane.xlu0 %810
        %vm812 = vcmp.eq.f32.partialorder %v809, %v811
        %v813 = vsel %vm812, %v808, inf
        %814 = vmin.xlane.f32.xlu0 %v813
        %v815 = vpop.xlane.xlu0 %814
        %v816 = vcvt.f32.s32 %v815
        %v817 = vcvt.f32.s32 %v811
        %v818 = vshll.u32 %v817, 16
        %v819 = vadd.s32 %v818, %v816
        %v820 = vsel %vm280, %v804, 2147483647
        %v821 = vand.u32 %v820, 65535
        %v822 = vshra.s32 %v820, 16
        %v823 = vcvt.s32.f32 %v821
        %v824 = vcvt.s32.f32 %v822
        %825 = vmin.xlane.f32.xlu0 %v824
        %v826 = vpop.xlane.xlu0 %825
        %vm827 = vcmp.eq.f32.partialorder %v824, %v826
        %v828 = vsel %vm827, %v823, inf
        %829 = vmin.xlane.f32.xlu0 %v828
        %v830 = vpop.xlane.xlu0 %829
        %v831 = vcvt.f32.s32 %v830
        %v832 = vcvt.f32.s32 %v826
        %v833 = vshll.u32 %v832, 16
        %v834 = vadd.s32 %v833, %v831
        %v835 = vand.u32 %v819, 31
        %v836 = vand.u32 %v834, 31
        %v837 = vand.u32 %v819, 4294967264
        %v838 = vand.u32 %v834, 4294967264
        %v839 = vshra.s32 %v837, 31
        %v840 = vshra.s32 %v838, 31
        %v841 = vand.u32 %v839, 2147483647
        %v842 = vand.u32 %v840, 2147483647
        %v843 = vxor.u32 %v837, %v841
        %v844 = vxor.u32 %v838, %v842
        %v847 = vmul.f32 %v843, -10.0
        %v848 = vmul.f32 %v844, -10.0
        %v849 = vmul.f32 %v847, 1.442695
        %v850 = vpow.pop %v849
        %v851 = vmul.f32 %v848, 1.442695
        %v852 = vpow.pop %v851
        %v853 = vadd.f32 %v784, %v850
        %v854 = vadd.f32 %v785, %v852
        %vm855 = vcmp.gt.s32.totalorder %v835, %v276
        %vm856 = vcmp.gt.s32.totalorder %v836, %v277
        %v857 = vsel %vm855, 1, 0
        %v858 = vsel %vm856, 1, 0
        %v859 = vsub.s32 %v835, %v857
        %v860 = vsub.s32 %v836, %v858
        %vm861 = vcmp.eq.s32.totalorder %v419, 5
        %862 = vset.pattern.permute.xlu0 0
        %863 = vperm.xlu0 %862, %v859
        %v864 = vpop.permute.xlu0 %863
        %865 = vset.pattern.permute.xlu0 0
        %866 = vperm.xlu0 %865, %v860
        %v867 = vpop.permute.xlu0 %866
        %v868 = vsel %vm861, %v864, %v799
        %v869 = vsel %vm861, %v867, %v800
        %vm870 = vcmp.eq.s32.totalorder %v803, %v819
        %vm871 = vcmp.eq.s32.totalorder %v804, %v834
        %v872 = vsel %vm870, 2147483647, %v803
        %v873 = vsel %vm871, 2147483647, %v804
        %v874 = vsel %vm280, %v872, 2147483647
        %v875 = vand.u32 %v874, 65535
        %v876 = vshra.s32 %v874, 16
        %v877 = vcvt.s32.f32 %v875
        %v878 = vcvt.s32.f32 %v876
        %879 = vmin.xlane.f32.xlu0 %v878
        %v880 = vpop.xlane.xlu0 %879
        %vm881 = vcmp.eq.f32.partialorder %v878, %v880
        %v882 = vsel %vm881, %v877, inf
        %883 = vmin.xlane.f32.xlu0 %v882
        %v884 = vpop.xlane.xlu0 %883
        %v885 = vcvt.f32.s32 %v884
        %v886 = vcvt.f32.s32 %v880
        %v887 = vshll.u32 %v886, 16
        %v888 = vadd.s32 %v887, %v885
        %v889 = vsel %vm280, %v873, 2147483647
        %v890 = vand.u32 %v889, 65535
        %v891 = vshra.s32 %v889, 16
        %v892 = vcvt.s32.f32 %v890
        %v893 = vcvt.s32.f32 %v891
        %894 = vmin.xlane.f32.xlu0 %v893
        %v895 = vpop.xlane.xlu0 %894
        %vm896 = vcmp.eq.f32.partialorder %v893, %v895
        %v897 = vsel %vm896, %v892, inf
        %898 = vmin.xlane.f32.xlu0 %v897
        %v899 = vpop.xlane.xlu0 %898
        %v900 = vcvt.f32.s32 %v899
        %v901 = vcvt.f32.s32 %v895
        %v902 = vshll.u32 %v901, 16
        %v903 = vadd.s32 %v902, %v900
        %v904 = vand.u32 %v888, 31
        %v905 = vand.u32 %v903, 31
        %v906 = vand.u32 %v888, 4294967264
        %v907 = vand.u32 %v903, 4294967264
        %v908 = vshra.s32 %v906, 31
        %v909 = vshra.s32 %v907, 31
        %v910 = vand.u32 %v908, 2147483647
        %v911 = vand.u32 %v909, 2147483647
        %v912 = vxor.u32 %v906, %v910
        %v913 = vxor.u32 %v907, %v911
        %v916 = vmul.f32 %v912, -10.0
        %v917 = vmul.f32 %v913, -10.0
        %v918 = vmul.f32 %v916, 1.442695
        %v919 = vpow.pop %v918
        %v920 = vmul.f32 %v917, 1.442695
        %v921 = vpow.pop %v920
        %v922 = vadd.f32 %v853, %v919
        %v923 = vadd.f32 %v854, %v921
        %vm924 = vcmp.gt.s32.totalorder %v904, %v276
        %vm925 = vcmp.gt.s32.totalorder %v905, %v277
        %v926 = vsel %vm924, 1, 0
        %v927 = vsel %vm925, 1, 0
        %v928 = vsub.s32 %v904, %v926
        %v929 = vsub.s32 %v905, %v927
        %vm930 = vcmp.eq.s32.totalorder %v419, 6
        %931 = vset.pattern.permute.xlu0 0
        %932 = vperm.xlu0 %931, %v928
        %v933 = vpop.permute.xlu0 %932
        %934 = vset.pattern.permute.xlu0 0
        %935 = vperm.xlu0 %934, %v929
        %v936 = vpop.permute.xlu0 %935
        %v937 = vsel %vm930, %v933, %v868
        %v938 = vsel %vm930, %v936, %v869
        %vm939 = vcmp.eq.s32.totalorder %v872, %v888
        %vm940 = vcmp.eq.s32.totalorder %v873, %v903
        %v941 = vsel %vm939, 2147483647, %v872
        %v942 = vsel %vm940, 2147483647, %v873
        %v943 = vsel %vm280, %v941, 2147483647
        %v944 = vand.u32 %v943, 65535
        %v945 = vshra.s32 %v943, 16
        %v946 = vcvt.s32.f32 %v944
        %v947 = vcvt.s32.f32 %v945
        %948 = vmin.xlane.f32.xlu0 %v947
        %v949 = vpop.xlane.xlu0 %948
        %vm950 = vcmp.eq.f32.partialorder %v947, %v949
        %v951 = vsel %vm950, %v946, inf
        %952 = vmin.xlane.f32.xlu0 %v951
        %v953 = vpop.xlane.xlu0 %952
        %v954 = vcvt.f32.s32 %v953
        %v955 = vcvt.f32.s32 %v949
        %v956 = vshll.u32 %v955, 16
        %v957 = vadd.s32 %v956, %v954
        %v958 = vsel %vm280, %v942, 2147483647
        %v959 = vand.u32 %v958, 65535
        %v960 = vshra.s32 %v958, 16
        %v961 = vcvt.s32.f32 %v959
        %v962 = vcvt.s32.f32 %v960
        %963 = vmin.xlane.f32.xlu0 %v962
        %v964 = vpop.xlane.xlu0 %963
        %vm965 = vcmp.eq.f32.partialorder %v962, %v964
        %v966 = vsel %vm965, %v961, inf
        %967 = vmin.xlane.f32.xlu0 %v966
        %v968 = vpop.xlane.xlu0 %967
        %v969 = vcvt.f32.s32 %v968
        %v970 = vcvt.f32.s32 %v964
        %v971 = vshll.u32 %v970, 16
        %v972 = vadd.s32 %v971, %v969
        %v973 = vand.u32 %v957, 31
        %v974 = vand.u32 %v972, 31
        %v975 = vand.u32 %v957, 4294967264
        %v976 = vand.u32 %v972, 4294967264
        %v977 = vshra.s32 %v975, 31
        %v978 = vshra.s32 %v976, 31
        %v979 = vand.u32 %v977, 2147483647
        %v980 = vand.u32 %v978, 2147483647
        %v981 = vxor.u32 %v975, %v979
        %v982 = vxor.u32 %v976, %v980
        %v985 = vmul.f32 %v981, -10.0
        %v986 = vmul.f32 %v982, -10.0
        %v987 = vmul.f32 %v985, 1.442695
        %v988 = vpow.pop %v987
        %v989 = vmul.f32 %v986, 1.442695
        %v990 = vpow.pop %v989
        %v991 = vadd.f32 %v922, %v988
        %v992 = vadd.f32 %v923, %v990
        %vm993 = vcmp.gt.s32.totalorder %v973, %v276
        %vm994 = vcmp.gt.s32.totalorder %v974, %v277
        %v995 = vsel %vm993, 1, 0
        %v996 = vsel %vm994, 1, 0
        %v997 = vsub.s32 %v973, %v995
        %v998 = vsub.s32 %v974, %v996
        %vm999 = vcmp.eq.s32.totalorder %v419, 7
        %1000 = vset.pattern.permute.xlu0 0
        %1001 = vperm.xlu0 %1000, %v997
        %v1002 = vpop.permute.xlu0 %1001
        %1003 = vset.pattern.permute.xlu0 0
        %1004 = vperm.xlu0 %1003, %v998
        %v1005 = vpop.permute.xlu0 %1004
        %v1006 = vsel %vm999, %v1002, %v937
        %v1007 = vsel %vm999, %v1005, %v938
        %vm1008 = vcmp.eq.s32.totalorder %v941, %v957
        %vm1009 = vcmp.eq.s32.totalorder %v942, %v972
        %v1010 = vsel %vm1008, 2147483647, %v941
        %v1011 = vsel %vm1009, 2147483647, %v942
        %v1012 = vsel %vm280, %v1010, 2147483647
        %v1013 = vand.u32 %v1012, 65535
        %v1014 = vshra.s32 %v1012, 16
        %v1015 = vcvt.s32.f32 %v1013
        %v1016 = vcvt.s32.f32 %v1014
        %1017 = vmin.xlane.f32.xlu0 %v1016
        %v1018 = vpop.xlane.xlu0 %1017
        %vm1019 = vcmp.eq.f32.partialorder %v1016, %v1018
        %v1020 = vsel %vm1019, %v1015, inf
        %1021 = vmin.xlane.f32.xlu0 %v1020
        %v1022 = vpop.xlane.xlu0 %1021
        %v1023 = vcvt.f32.s32 %v1022
        %v1024 = vcvt.f32.s32 %v1018
        %v1025 = vshll.u32 %v1024, 16
        %v1026 = vadd.s32 %v1025, %v1023
        %v1027 = vsel %vm280, %v1011, 2147483647
        %v1028 = vand.u32 %v1027, 65535
        %v1029 = vshra.s32 %v1027, 16
        %v1030 = vcvt.s32.f32 %v1028
        %v1031 = vcvt.s32.f32 %v1029
        %1032 = vmin.xlane.f32.xlu0 %v1031
        %v1033 = vpop.xlane.xlu0 %1032
        %vm1034 = vcmp.eq.f32.partialorder %v1031, %v1033
        %v1035 = vsel %vm1034, %v1030, inf
        %1036 = vmin.xlane.f32.xlu0 %v1035
        %v1037 = vpop.xlane.xlu0 %1036
        %v1038 = vcvt.f32.s32 %v1037
        %v1039 = vcvt.f32.s32 %v1033
        %v1040 = vshll.u32 %v1039, 16
        %v1041 = vadd.s32 %v1040, %v1038
        %v1042 = vand.u32 %v1026, 31
        %v1043 = vand.u32 %v1041, 31
        %v1044 = vand.u32 %v1026, 4294967264
        %v1045 = vand.u32 %v1041, 4294967264
        %v1046 = vshra.s32 %v1044, 31
        %v1047 = vshra.s32 %v1045, 31
        %v1048 = vand.u32 %v1046, 2147483647
        %v1049 = vand.u32 %v1047, 2147483647
        %v1050 = vxor.u32 %v1044, %v1048
        %v1051 = vxor.u32 %v1045, %v1049
        %v1054 = vmul.f32 %v1050, -10.0
        %v1055 = vmul.f32 %v1051, -10.0
        %v1056 = vmul.f32 %v1054, 1.442695
        %v1057 = vpow.pop %v1056
        %v1058 = vmul.f32 %v1055, 1.442695
        %v1059 = vpow.pop %v1058
        %v1060 = vadd.f32 %v991, %v1057
        %v1061 = vadd.f32 %v992, %v1059
        %vm1062 = vcmp.gt.s32.totalorder %v1042, %v276
        %vm1063 = vcmp.gt.s32.totalorder %v1043, %v277
        %v1064 = vsel %vm1062, 1, 0
        %v1065 = vsel %vm1063, 1, 0
        %v1066 = vsub.s32 %v1042, %v1064
        %v1067 = vsub.s32 %v1043, %v1065
        %vm1068 = vcmp.eq.s32.totalorder %v419, 8
        %1069 = vset.pattern.permute.xlu0 0
        %1070 = vperm.xlu0 %1069, %v1066
        %v1071 = vpop.permute.xlu0 %1070
        %1072 = vset.pattern.permute.xlu0 0
        %1073 = vperm.xlu0 %1072, %v1067
        %v1074 = vpop.permute.xlu0 %1073
        %v1075 = vsel %vm1068, %v1071, %v1006
        %v1076 = vsel %vm1068, %v1074, %v1007
        %vm1077 = vcmp.eq.s32.totalorder %v1010, %v1026
        %vm1078 = vcmp.eq.s32.totalorder %v1011, %v1041
        %v1079 = vsel %vm1077, 2147483647, %v1010
        %v1080 = vsel %vm1078, 2147483647, %v1011
        %v1081 = vsel %vm280, %v1079, 2147483647
        %v1082 = vand.u32 %v1081, 65535
        %v1083 = vshra.s32 %v1081, 16
        %v1084 = vcvt.s32.f32 %v1082
        %v1085 = vcvt.s32.f32 %v1083
        %1086 = vmin.xlane.f32.xlu0 %v1085
        %v1087 = vpop.xlane.xlu0 %1086
        %vm1088 = vcmp.eq.f32.partialorder %v1085, %v1087
        %v1089 = vsel %vm1088, %v1084, inf
        %1090 = vmin.xlane.f32.xlu0 %v1089
        %v1091 = vpop.xlane.xlu0 %1090
        %v1092 = vcvt.f32.s32 %v1091
        %v1093 = vcvt.f32.s32 %v1087
        %v1094 = vshll.u32 %v1093, 16
        %v1095 = vadd.s32 %v1094, %v1092
        %v1096 = vsel %vm280, %v1080, 2147483647
        %v1097 = vand.u32 %v1096, 65535
        %v1098 = vshra.s32 %v1096, 16
        %v1099 = vcvt.s32.f32 %v1097
        %v1100 = vcvt.s32.f32 %v1098
        %1101 = vmin.xlane.f32.xlu0 %v1100
        %v1102 = vpop.xlane.xlu0 %1101
        %vm1103 = vcmp.eq.f32.partialorder %v1100, %v1102
        %v1104 = vsel %vm1103, %v1099, inf
        %1105 = vmin.xlane.f32.xlu0 %v1104
        %v1106 = vpop.xlane.xlu0 %1105
        %v1107 = vcvt.f32.s32 %v1106
        %v1108 = vcvt.f32.s32 %v1102
        %v1109 = vshll.u32 %v1108, 16
        %v1110 = vadd.s32 %v1109, %v1107
        %v1111 = vand.u32 %v1095, 31
        %v1112 = vand.u32 %v1110, 31
        %v1113 = vand.u32 %v1095, 4294967264
        %v1114 = vand.u32 %v1110, 4294967264
        %v1115 = vshra.s32 %v1113, 31
        %v1116 = vshra.s32 %v1114, 31
        %v1117 = vand.u32 %v1115, 2147483647
        %v1118 = vand.u32 %v1116, 2147483647
        %v1119 = vxor.u32 %v1113, %v1117
        %v1120 = vxor.u32 %v1114, %v1118
        %v1123 = vmul.f32 %v1119, -10.0
        %v1124 = vmul.f32 %v1120, -10.0
        %v1125 = vmul.f32 %v1123, 1.442695
        %v1126 = vpow.pop %v1125
        %v1127 = vmul.f32 %v1124, 1.442695
        %v1128 = vpow.pop %v1127
        %v1129 = vadd.f32 %v1060, %v1126
        %v1130 = vadd.f32 %v1061, %v1128
        %vm1131 = vcmp.gt.s32.totalorder %v1111, %v276
        %vm1132 = vcmp.gt.s32.totalorder %v1112, %v277
        %v1133 = vsel %vm1131, 1, 0
        %v1134 = vsel %vm1132, 1, 0
        %v1135 = vsub.s32 %v1111, %v1133
        %v1136 = vsub.s32 %v1112, %v1134
        %vm1137 = vcmp.eq.s32.totalorder %v419, 9
        %1138 = vset.pattern.permute.xlu0 0
        %1139 = vperm.xlu0 %1138, %v1135
        %v1140 = vpop.permute.xlu0 %1139
        %1141 = vset.pattern.permute.xlu0 0
        %1142 = vperm.xlu0 %1141, %v1136
        %v1143 = vpop.permute.xlu0 %1142
        %v1144 = vsel %vm1137, %v1140, %v1075
        %v1145 = vsel %vm1137, %v1143, %v1076
        %v1146 = vlog2.pop %v1129
        %v1147 = vmul.f32 %v1146, 0.6931472
        %v1148 = vlog2.pop %v1130
        %v1149 = vmul.f32 %v1148, 0.6931472
        %v1150 = vsub.f32 %v443, %v1147
        %v1151 = vsub.f32 %v445, %v1149
        %v1152 = vadd.f32 %v1150, %v1151
        %v1153 = vrot.slane %v1152, 4
        %v1154 = vadd.f32 %v1152, %v1153
        %v1155 = vrot.slane %v1154, 2
        %v1156 = vadd.f32 %v1154, %v1155
        %v1157 = vrot.slane %v1156, 1
        %v1158 = vadd.f32 %v1156, %v1157
        %v1159 = vrcp.pop 16.0
        %v1160 = vmul.f32 16.0, %v1159
        %v1161 = vsub.f32 1.0, %v1160
        %v1162 = vmul.f32 %v1159, %v1161
        %v1163 = vadd.f32 %v1159, %v1162
        %vm1164 = vweird.f32 %v1159
        %v1165 = vsel %vm1164, %v1159, %v1163
        %v1166 = vmul.f32 %v1158, %v1165
        %vm1167 = vcmp.ne.f32.partialorder %v1166, %v1166
        %v1168 = vsel %vm1167, 0.0, %v1166
        %v1169 = vadd.f32 %v1168, 0.0
        %vm1170 = vcmask 0
        %1171 = vst.msk [vmem:[%s268] sm:$0x1] %vm1170, %v1169
        %v1172 = vpack.c.b16 %v1144, %v1144
        %v1173 = vpack.c.b16 %v1145, %v1145
        %1174 = vst [vmem:[%s265] sm:$0xf] %v1172
        %1175 = vst [vmem:[%s265 + $0x4] sm:$0xf] %v1173
        %p1176 = scmp.lt.s32.totalorder %s25, 1
        %s1177 = scalar_select %p1176, %s25, 1
        %s1178 = scalar_lea.vmem %s3, %s1177
        %s1179 = sand.u32 %s132, 1
        %s1180 = scalar_lea.sflag [#allocation4], %s1179
        %s1181 = sand.u32 %s132, 1
        %s1182 = smul.addr %s1181, 8
        %s1183 = scalar_lea.vmem [#allocation7], %s1182
        // Predicated region
        $region41: #{tpu_custom_call.1} parent=31 // pred_check
          %p1184 = pneg %p116
        $region42: #{tpu_custom_call.1} parent=31 // pred_check_branch
          %1186 = sbr.rel (%p1184) target = $region44
        $region43: #{tpu_custom_call.1} parent=31 // pred_region
          _
        $region44: #{tpu_custom_call.1} parent=31 // pred_fallthru
          _
        // Predicated region
        $region45: #{tpu_custom_call.1} parent=31 // pred_check
          %p1187 = pneg %p142
        $region46: #{tpu_custom_call.1} parent=31 // pred_check_branch
          %1189 = sbr.rel (%p1187) target = $region48
        $region47: #{tpu_custom_call.1} parent=31 // pred_region
          %1191 = vsyncadd %s1180, 0
          %s1192 = smul.addr %s25, 2
          %s1193 = smul.addr %s1192, 4
          %s1194 = scalar_lea.hbm %s4, %s1193
          %s1195 = sshll.u32 %s1183, 4
          %s1196 = int_to_ptr.vmem [resolvable:$true] %s1195
          %s1197 = sshll.u32 %s1194, 4
          %s1198 = int_to_ptr.hbm [resolvable:$true] %s1197
          %1203 = dma.vmem_to_hbm [thread:$0]  %s1196, 128, %s1198, %s1180, 64, 64, 4
        $region48: #{tpu_custom_call.1} parent=31 // pred_fallthru
          _
      $region32: #{tpu_custom_call.1} parent=5 // pred_fallthru
        _
      %p1204 = scmp.le.s32.totalorder 2, %s20
      // Predicated region
      $region49: #{tpu_custom_call.1} parent=5 // pred_check
        %p1205 = pneg %p1204
      $region50: #{tpu_custom_call.1} parent=5 // pred_check_branch
        %1207 = sbr.rel (%p1205) target = $region52
      $region51: #{tpu_custom_call.1} parent=5 // pred_region
        %s1208 = ssub.s32 %s20, 2
        // Predicated region
        $region53: #{tpu_custom_call.1} parent=51 // pred_check
          %p1209 = pneg %p122
        $region54: #{tpu_custom_call.1} parent=51 // pred_check_branch
          %1211 = sbr.rel (%p1209) target = $region56
        $region55: #{tpu_custom_call.1} parent=51 // pred_region
          %p1212 = scmp.lt.s32.totalorder %s26, 1
          %s1213 = scalar_select %p1212, %s26, 1
          %s1214 = scalar_lea.vmem %s3, %s1213
        $region56: #{tpu_custom_call.1} parent=51 // pred_fallthru
          _
        // Predicated region
        $region57: #{tpu_custom_call.1} parent=51 // pred_check
          %p1215 = pneg %p148
        $region58: #{tpu_custom_call.1} parent=51 // pred_check_branch
          %1217 = sbr.rel (%p1215) target = $region60
        $region59: #{tpu_custom_call.1} parent=51 // pred_region
          %s1218 = sand.u32 %s133, 1
          %s1219 = scalar_lea.sflag [#allocation4], %s1218
          %s1220 = sand.u32 %s133, 1
          %s1221 = smul.addr %s1220, 8
          %s1222 = scalar_lea.vmem [#allocation7], %s1221
          %1224 = dma.done %s1219, 128
        $region60: #{tpu_custom_call.1} parent=51 // pred_fallthru
          _
      $region52: #{tpu_custom_call.1} parent=5 // pred_fallthru
        _
    $region6: #{tpu_custom_call.1} parent=1 // loop_footer
      %s24 = sadd.s32 1, %s20
    $region7: #{tpu_custom_call.1} parent=1 // loop_footer_branch
      %19 = sbr.rel target = $region3
    $region8: #{tpu_custom_call.1} parent=1 // loop_exit
      _
    %1225 = vsyncpa [#allocation3], 1
    %s1226 = scalar_lea.sflag [#allocation3], 1
    %1227 = vsyncpa %s1226, 1
    %1228 = vsyncpa [#allocation6], 1
    %s1229 = scalar_lea.sflag [#allocation6], 1
    %1230 = vsyncpa %s1229, 1
    %1231 = vsyncpa [#allocation4], 1
    %s1232 = scalar_lea.sflag [#allocation4], 1
    %1233 = vsyncpa %s1232, 1

</llo_original>
